<compile_context>
chip_gen: v6e
topology: v6e:2x2x1
jax: 0.10.0
libtpu: 0.0.40
codegen_flags: <defaults>
</compile_context>

<pallas_src>
import math

import jax
import jax.numpy as jnp
from jax import lax
from jax.experimental import pallas as pl
from jax.experimental.pallas import tpu as pltpu


# ---------------------------------------------------------------------------
# Fused kernel: DPCA gate + ReLU + concat + (3x3 conv -> BN -> ReLU) x N.
# ---------------------------------------------------------------------------
def _make_fused_kernel(C, HW, tb, layer_dims, shifts):
    n_layers = len(layer_dims)
    n_w = 2 * n_layers

    def kernel(x_ref, skip_ref, s_ref, gw_ref, m_ref, *rest):
        # x_ref:    (tb, C, h*w)   low-res input, flattened spatial
        # skip_ref: (tb, C, HW)    skip connection, flattened spatial
        # s_ref:    (h*w, HW)      0/1 nearest-2x-upsample selection matrix
        # gw_ref:   (C, 2C)        0.5 * [band(conv1d_1) | band(conv1d_2)]
        # m_ref:    (9, tb*HW)     per-tap zero-padding masks (batch-tiled)
        # rest:     w_0, b_0, ..., w_{n-1}, b_{n-1}, o_ref, feats, win
        w_refs = rest[0:n_w:2]           # (Cout, 9*Cin) bf16, BN folded
        b_refs = rest[1:n_w:2]           # (Cout, 1) f32, BN folded
        o_ref = rest[n_w]                # (tb, Cout_last, HW)
        feats = rest[n_w + 1]            # VMEM (Cmax, tb*HW) f32 running slab
        win = rest[n_w + 2]              # VMEM (9*Cin_max, tb*HW) bf16 im2col

        s_mat = s_ref[...]
        gw = gw_ref[...]

        # ---- DPCA gate + ReLU + upsample + channel concat, into `feats` ----
        for t in range(tb):
            lo, hi = t * HW, (t + 1) * HW
            skip_t = skip_ref[t]                                     # (C, HW)
            # Nearest-2x upsample as a selection matmul on the otherwise idle MXU.
            up_t = jnp.dot(x_ref[t], s_mat,
                           preferred_element_type=jnp.float32)       # (C, HW)
            feats[0:C, lo:hi] = skip_t
            feats[C:2 * C, lo:hi] = up_t
            # One lane-reduce yields both pooled means as a (2C, 1) column.
            pooled = jnp.mean(feats[0:2 * C, lo:hi], axis=-1, keepdims=True)
            att = jnp.dot(gw, pooled, preferred_element_type=jnp.float32)
            gate = jax.nn.sigmoid(att)                                # (C, 1)
            feats[0:C, lo:hi] = jnp.maximum(skip_t * gate, 0.0)

        # ---- conv layers: im2col + one MXU dot per layer ----
        for l, (cin, cout) in enumerate(layer_dims):
            xin = feats[0:cin, :]                               # (cin, tb*HW) f32
            for o in range(9):
                if shifts[o] == 0:     # centre tap: no shift, every position valid
                    w_o = xin
                else:
                    # Roll over the packed lane axis; the mask zeroes exactly the
                    # positions whose 3x3 neighbour falls outside the image, which
                    # are also the only positions that would read wrapped /
                    # cross-batch data -> equivalent to zero padding.
                    w_o = pltpu.roll(xin, shift=shifts[o], axis=1) * m_ref[o]
                win[o * cin:(o + 1) * cin, :] = w_o.astype(win.dtype)
            acc = jnp.dot(w_refs[l][...], win[0:9 * cin, :],
                          preferred_element_type=jnp.float32)   # (cout, tb*HW) f32
            y = jnp.maximum(acc + b_refs[l][...], 0.0)
            if l + 1 < n_layers:
                feats[0:cout, :] = y
            else:
                for t in range(tb):
                    o_ref[t] = y[:, t * HW:(t + 1) * HW].astype(o_ref.dtype)

    return kernel


# ---------------------------------------------------------------------------
# Host-side parameter / layout preparation.
# ---------------------------------------------------------------------------
def _band_matrix(kw, channels):
    """(C, C) matrix A with A[c, c'] = kw[c' - c + pad]; A @ pooled equals the
    zero-padded 1D cross-correlation done by nn.Conv1d(1, 1, k, bias=False)."""
    k = kw.shape[0]
    pad = (k - 1) // 2
    rows = jnp.arange(channels)[:, None]
    cols = jnp.arange(channels)[None, :]
    idx = cols - rows + pad
    valid = (idx >= 0) & (idx < k)
    return jnp.where(valid, kw[jnp.clip(idx, 0, k - 1)], 0.0).astype(jnp.float32)


def _fold_bn(w, b, gamma, beta, mean, var, eps=1e-5):
    """Fold inference-mode BatchNorm into the conv weights / bias."""
    inv = gamma / jnp.sqrt(var + eps)
    return w * inv[:, None, None, None], (b - mean) * inv + beta


def _upsample_matrix(h, w):
    """(h*w, 4*h*w) 0/1 matrix S so that x_flat(C, h*w) @ S equals the
    nearest-neighbour 2x upsample of x, flattened over (2h, 2w)."""
    H, W = 2 * h, 2 * w
    I = jnp.arange(H)[:, None]
    J = jnp.arange(W)[None, :]
    src = ((I // 2) * w + (J // 2)).reshape(H * W)      # low-res source per hi pixel
    return (jnp.arange(h * w)[:, None] == src[None, :]).astype(jnp.float32)


def _conv3x3_shifts_and_masks(H, W, tb):
    """Static lane shifts + validity masks so that, on the packed (C, tb*H*W)
    layout, roll(x, shift_o, axis=-1) * mask_o equals the zero-padded input at
    spatial offset o for every batch element in the tile."""
    HW = H * W
    L = tb * HW
    ii = jnp.arange(H)[:, None]
    jj = jnp.arange(W)[None, :]
    shifts, masks = [], []
    for ky in range(3):
        for kx in range(3):
            s = (ky - 1) * W + (kx - 1)
            shifts.append((-s) % L)   # roll semantics: out[p] = x[p - shift]
            si, sj = ii + (ky - 1), jj + (kx - 1)
            m = ((si >= 0) & (si < H) & (sj >= 0) & (sj < W))
            masks.append(jnp.tile(m.astype(jnp.float32).reshape(HW), tb))
    return tuple(shifts), jnp.stack(masks)               # 9 ints, (9, tb*HW) f32


def _tensorcores_per_chip():
    """Best-effort TensorCores-per-chip count (v7x = 2; v5e/v6e = 1)."""
    try:
        kind = jax.devices()[0].device_kind.lower()
    except Exception:
        return 1
    return 2 if ("v7" in kind or "7x" in kind) else 1


def _batch_tile(B, n_cores):
    """Single grid step on 1-TC chips (no forced split); on multi-TC chips keep
    >= n_cores grid steps so the 'parallel' batch axis shards across cores."""
    if n_cores <= 1:
        return B
    best = 1
    for tb in range(1, B + 1):
        if B % tb == 0 and B // tb >= n_cores:
            best = tb
    return best


def upblock_attention_high_forward(x, skip, dpca_w1, dpca_w2, conv_params):
    """x: (B, C, h, w); skip: (B, C, 2h, 2w); C = in_channels // 2."""
    B, C, h, w = x.shape
    H, W = 2 * h, 2 * w
    HW, hw = H * W, h * w
    tb = _batch_tile(B, _tensorcores_per_chip())
    L = tb * HW

    x_f = x.reshape(B, C, hw)
    skip_f = skip.reshape(B, C, HW)

    s_mat = _upsample_matrix(h, w)                                       # (hw, HW)
    gate_w = 0.5 * jnp.concatenate(
        [_band_matrix(dpca_w1, C), _band_matrix(dpca_w2, C)], axis=1)    # (C, 2C)
    shifts, masks = _conv3x3_shifts_and_masks(H, W, tb)

    # Fold BN, reshape conv weights into (Cout, 9*Cin) im2col slabs, cast bf16.
    layer_dims, weight_args = [], []
    cin = 2 * C
    for p in conv_params:
        # TODO(synk): BatchNorm uses inference-mode running statistics folded into
        # the conv; training-mode batch statistics are not implemented.
        wf, bf = _fold_bn(p["w"], p["b"], p["gamma"], p["beta"], p["mean"], p["var"])
        cout = wf.shape[0]
        # [cout, cin, ky, kx] -> [cout, (ky*3+kx)*cin + cin_idx] to match the
        # im2col scratch row order (tap-major, channel-minor).
        w2d = wf.transpose(0, 2, 3, 1).reshape(cout, 9 * cin)
        weight_args += [w2d.astype(jnp.bfloat16),
                        bf.reshape(cout, 1).astype(jnp.float32)]
        layer_dims.append((cin, cout))
        cin = cout
    cmax = max([2 * C] + [co for _, co in layer_dims])
    kmax = max(9 * ci for ci, _ in layer_dims)
    cout_last = layer_dims[-1][1]

    in_specs = [
        pl.BlockSpec((tb, C, hw), lambda b: (b, 0, 0)),
        pl.BlockSpec((tb, C, HW), lambda b: (b, 0, 0)),
        pl.BlockSpec((hw, HW), lambda b: (0, 0)),
        pl.BlockSpec((C, 2 * C), lambda b: (0, 0)),
        pl.BlockSpec((9, L), lambda b: (0, 0)),
    ]
    for ci, co in layer_dims:
        in_specs.append(pl.BlockSpec((co, 9 * ci), lambda b: (0, 0)))
        in_specs.append(pl.BlockSpec((co, 1), lambda b: (0, 0)))

    kernel = _make_fused_kernel(C, HW, tb, tuple(layer_dims), shifts)
    out = pl.pallas_call(
        kernel,
        out_shape=jax.ShapeDtypeStruct((B, cout_last, HW), x.dtype),
        grid_spec=pltpu.PrefetchScalarGridSpec(
            num_scalar_prefetch=0,
            grid=(B // tb,),
            in_specs=in_specs,
            out_specs=pl.BlockSpec((tb, cout_last, HW), lambda b: (b, 0, 0)),
            scratch_shapes=[
                pltpu.VMEM((cmax, L), jnp.float32),      # running feature slab
                pltpu.VMEM((kmax, L), jnp.bfloat16),     # im2col window stack
            ],
        ),
        compiler_params=pltpu.CompilerParams(dimension_semantics=("parallel",)),
    )(x_f, skip_f, s_mat, gate_w, masks, *weight_args)

    return out.reshape(B, cout_last, H, W)


# ---------------------------------------------------------------------------
# Pure-JAX reference (PyTorch forward semantics).
# ---------------------------------------------------------------------------
def _channel_conv1d_ref(v, kw):
    k = kw.shape[0]
    pad = (k - 1) // 2
    C = v.shape[1]
    vp = jnp.pad(v, ((0, 0), (pad, pad)))
    out = jnp.zeros_like(v)
    for t in range(k):
        out = out + kw[t] * vp[:, t:t + C]
    return out


def upblock_attention_high_reference(x, skip, dpca_w1, dpca_w2, conv_params):
    up = jnp.repeat(jnp.repeat(x, 2, axis=2), 2, axis=3)
    att_x = _channel_conv1d_ref(jnp.mean(skip, axis=(2, 3)), dpca_w1)
    att_g = _channel_conv1d_ref(jnp.mean(up, axis=(2, 3)), dpca_w2)
    gate = jax.nn.sigmoid(0.5 * (att_x + att_g))[:, :, None, None]
    feats = jnp.concatenate([jnp.maximum(skip * gate, 0.0), up], axis=1)
    for p in conv_params:
        y = lax.conv_general_dilated(
            feats, p["w"], window_strides=(1, 1), padding="SAME",
            dimension_numbers=("NCHW", "OIHW", "NCHW"),
            precision=lax.Precision.HIGHEST)
        y = y + p["b"][None, :, None, None]
        inv = p["gamma"] / jnp.sqrt(p["var"] + 1e-5)
        y = (y - p["mean"][None, :, None, None]) * inv[None, :, None, None] \
            + p["beta"][None, :, None, None]
        feats = jnp.maximum(y, 0.0)
    return feats


if __name__ == "__main__":
    B = 2
    in_channels = 16            # channels after the concat
    C = in_channels // 2        # per-branch channels (DPCABlock channels)
    out_channels = 16
    nb_Conv = 2
    h = w = 8                   # low-res input -> 16x16 after the 2x upsample

    # DPCA Conv1d kernel size (gamma=2, b=1, forced odd), as in the module.
    ks = int(abs((math.log2(C) + 1) / 2))
    ks = ks if ks % 2 else ks + 1

    key = jax.random.PRNGKey(0)
    keys = jax.random.split(key, 4 + 6 * nb_Conv)
    x = jax.random.normal(keys[0], (B, C, h, w), jnp.float32)
    skip = jax.random.normal(keys[1], (B, C, 2 * h, 2 * w), jnp.float32)
    dpca_w1 = 0.5 * jax.random.normal(keys[2], (ks,), jnp.float32)
    dpca_w2 = 0.5 * jax.random.normal(keys[3], (ks,), jnp.float32)

    conv_params = []
    cin = in_channels
    for l in range(nb_Conv):
        k0, k1, k2, k3, k4, k5 = keys[4 + 6 * l: 4 + 6 * (l + 1)]
        conv_params.append(dict(
            w=0.2 * jax.random.normal(k0, (out_channels, cin, 3, 3), jnp.float32),
            b=0.1 * jax.random.normal(k1, (out_channels,), jnp.float32),
            gamma=1.0 + 0.1 * jax.random.normal(k2, (out_channels,), jnp.float32),
            beta=0.1 * jax.random.normal(k3, (out_channels,), jnp.float32),
            mean=0.1 * jax.random.normal(k4, (out_channels,), jnp.float32),
            var=0.5 + jax.nn.sigmoid(jax.random.normal(k5, (out_channels,), jnp.float32)),
        ))
        cin = out_channels

    fwd = jax.jit(upblock_attention_high_forward)
    out = jax.block_until_ready(fwd(x, skip, dpca_w1, dpca_w2, conv_params))

    ref = upblock_attention_high_reference(x, skip, dpca_w1, dpca_w2, conv_params)
    assert out.shape == (B, out_channels, 2 * h, 2 * w), out.shape
    # Tolerance covers the bf16 MXU operands used for the conv contractions
    # (f32 accumulation; every other arithmetic stage is f32).  Structural
    # errors (mask/shift/weight-layout bugs) would be O(1) and still trip this.
    err = float(jnp.max(jnp.abs(out - ref)))
    scale = float(jnp.max(jnp.abs(ref))) + 1e-6
    assert err <= 2e-2 * scale, (err, scale)
    print("KERNEL_OK")
</pallas_src>

<mosaic_0001>
module attributes {stable_mosaic.version = 11 : i64} {
  func.func @kernel(%arg0: i32, %arg1: memref<2x8x64xf32, #tpu.memory_space<vmem>>, %arg2: memref<2x8x256xf32, #tpu.memory_space<vmem>>, %arg3: memref<64x256xf32, #tpu.memory_space<vmem>>, %arg4: memref<8x16xf32, #tpu.memory_space<vmem>>, %arg5: memref<9x512xf32, #tpu.memory_space<vmem>>, %arg6: memref<16x144xbf16, #tpu.memory_space<vmem>>, %arg7: memref<16x1xf32, #tpu.memory_space<vmem>>, %arg8: memref<16x144xbf16, #tpu.memory_space<vmem>>, %arg9: memref<16x1xf32, #tpu.memory_space<vmem>>, %arg10: memref<2x16x256xf32, #tpu.memory_space<vmem>>, %arg11: memref<16x512xf32, #tpu.memory_space<vmem>>, %arg12: memref<144x512xbf16, #tpu.memory_space<vmem>>) attributes {dimension_semantics = [#tpu.dimension_semantics<parallel>], iteration_bounds = array<i64: 1>, scalar_prefetch = 0 : i64, scratch_operands = 2 : i64, tpu.core_type = #tpu.core_type<tc>, window_params = [{transform_indices = @transform_0, window_bounds = array<i64: 2, 8, 64>}, {transform_indices = @transform_1, window_bounds = array<i64: 2, 8, 256>}, {pipeline_mode = #tpu.pipeline_mode<synchronous>, transform_indices = @transform_2, window_bounds = array<i64: 64, 256>}, {pipeline_mode = #tpu.pipeline_mode<synchronous>, transform_indices = @transform_3, window_bounds = array<i64: 8, 16>}, {pipeline_mode = #tpu.pipeline_mode<synchronous>, transform_indices = @transform_4, window_bounds = array<i64: 9, 512>}, {pipeline_mode = #tpu.pipeline_mode<synchronous>, transform_indices = @transform_5, window_bounds = array<i64: 16, 144>}, {pipeline_mode = #tpu.pipeline_mode<synchronous>, transform_indices = @transform_6, window_bounds = array<i64: 16, 1>}, {pipeline_mode = #tpu.pipeline_mode<synchronous>, transform_indices = @transform_7, window_bounds = array<i64: 16, 144>}, {pipeline_mode = #tpu.pipeline_mode<synchronous>, transform_indices = @transform_8, window_bounds = array<i64: 16, 1>}, {transform_indices = @transform_9, window_bounds = array<i64: 2, 16, 256>}]} {
    %c0 = arith.constant 0 : index
    %c0_0 = arith.constant 0 : index
    %0 = vector.load %arg3[%c0, %c0_0] : memref<64x256xf32, #tpu.memory_space<vmem>>, vector<64x256xf32>
    %c0_1 = arith.constant 0 : index
    %c0_2 = arith.constant 0 : index
    %1 = vector.load %arg4[%c0_1, %c0_2] : memref<8x16xf32, #tpu.memory_space<vmem>>, vector<8x16xf32>
    %c0_3 = arith.constant 0 : index
    %c0_4 = arith.constant 0 : index
    %c0_5 = arith.constant 0 : index
    %2 = vector.load %arg2[%c0_3, %c0_4, %c0_5] : memref<2x8x256xf32, #tpu.memory_space<vmem>>, vector<1x8x256xf32>
    %3 = vector.shape_cast %2 : vector<1x8x256xf32> to vector<8x256xf32>
    %c0_6 = arith.constant 0 : index
    %c0_7 = arith.constant 0 : index
    %c0_8 = arith.constant 0 : index
    %4 = vector.load %arg1[%c0_6, %c0_7, %c0_8] : memref<2x8x64xf32, #tpu.memory_space<vmem>>, vector<1x8x64xf32>
    %5 = vector.shape_cast %4 : vector<1x8x64xf32> to vector<8x64xf32>
    %cst = arith.constant dense<0.000000e+00> : vector<8x256xf32>
    %6 = tpu.matmul %5, %0, %cst {dimension_numbers = #tpu.dot_dimension_numbers<[1], [0], [0], [1], [0, 0, 1, 1], [], []>} : vector<8x64xf32>, vector<64x256xf32>, vector<8x256xf32> -> vector<8x256xf32>
    %c0_9 = arith.constant 0 : index
    %c0_10 = arith.constant 0 : index
    %7 = vector.load %arg11[%c0_9, %c0_10] : memref<16x512xf32, #tpu.memory_space<vmem>>, vector<8x256xf32>
    tpu.vector_store %arg11[%c0_9, %c0_10], %3 {strides = array<i32>} : memref<16x512xf32, #tpu.memory_space<vmem>>, vector<8x256xf32>,
    %c8 = arith.constant 8 : index
    %c0_11 = arith.constant 0 : index
    %8 = vector.load %arg11[%c8, %c0_11] : memref<16x512xf32, #tpu.memory_space<vmem>>, vector<8x256xf32>
    tpu.vector_store %arg11[%c8, %c0_11], %6 {strides = array<i32>} : memref<16x512xf32, #tpu.memory_space<vmem>>, vector<8x256xf32>,
    %c0_12 = arith.constant 0 : index
    %c0_13 = arith.constant 0 : index
    %9 = vector.load %arg11[%c0_12, %c0_13] : memref<16x512xf32, #tpu.memory_space<vmem>>, vector<16x256xf32>
    %cst_14 = arith.constant dense<0.000000e+00> : vector<16xf32>
    %10 = vector.multi_reduction <add>, %9, %cst_14 [1] : vector<16x256xf32> to vector<16xf32>
    %11 = vector.shape_cast %10 : vector<16xf32> to vector<16x1xf32>
    %cst_15 = arith.constant 2.560000e+02 : f32
    %12 = vector.broadcast %cst_15 : f32 to vector<16x1xf32>
    %13 = arith.divf %11, %12 : vector<16x1xf32>
    %cst_16 = arith.constant dense<0.000000e+00> : vector<8x1xf32>
    %14 = tpu.matmul %1, %13, %cst_16 {dimension_numbers = #tpu.dot_dimension_numbers<[1], [0], [0], [1], [0, 0, 1, 1], [], []>} : vector<8x16xf32>, vector<16x1xf32>, vector<8x1xf32> -> vector<8x1xf32>
    %15 = arith.negf %14 : vector<8x1xf32>
    %16 = math.exp %15 : vector<8x1xf32>
    %cst_17 = arith.constant 1.000000e+00 : f32
    %17 = vector.broadcast %cst_17 : f32 to vector<8x1xf32>
    %18 = arith.addf %17, %16 : vector<8x1xf32>
    %19 = arith.divf %17, %18 : vector<8x1xf32>
    %20 = vector.broadcast %19 : vector<8x1xf32> to vector<8x256xf32>
    %21 = arith.mulf %3, %20 : vector<8x256xf32>
    %cst_18 = arith.constant 0.000000e+00 : f32
    %22 = vector.broadcast %cst_18 : f32 to vector<8x256xf32>
    %23 = arith.maximumf %21, %22 : vector<8x256xf32>
    %c0_19 = arith.constant 0 : index
    %c0_20 = arith.constant 0 : index
    %24 = vector.load %arg11[%c0_19, %c0_20] : memref<16x512xf32, #tpu.memory_space<vmem>>, vector<8x256xf32>
    tpu.vector_store %arg11[%c0_19, %c0_20], %23 {strides = array<i32>} : memref<16x512xf32, #tpu.memory_space<vmem>>, vector<8x256xf32>,
    %c1 = arith.constant 1 : index
    %c0_21 = arith.constant 0 : index
    %c0_22 = arith.constant 0 : index
    %25 = vector.load %arg2[%c1, %c0_21, %c0_22] : memref<2x8x256xf32, #tpu.memory_space<vmem>>, vector<1x8x256xf32>
    %26 = vector.shape_cast %25 : vector<1x8x256xf32> to vector<8x256xf32>
    %c1_23 = arith.constant 1 : index
    %c0_24 = arith.constant 0 : index
    %c0_25 = arith.constant 0 : index
    %27 = vector.load %arg1[%c1_23, %c0_24, %c0_25] : memref<2x8x64xf32, #tpu.memory_space<vmem>>, vector<1x8x64xf32>
    %28 = vector.shape_cast %27 : vector<1x8x64xf32> to vector<8x64xf32>
    %cst_26 = arith.constant dense<0.000000e+00> : vector<8x256xf32>
    %29 = tpu.matmul %28, %0, %cst_26 {dimension_numbers = #tpu.dot_dimension_numbers<[1], [0], [0], [1], [0, 0, 1, 1], [], []>} : vector<8x64xf32>, vector<64x256xf32>, vector<8x256xf32> -> vector<8x256xf32>
    %c0_27 = arith.constant 0 : index
    %c256 = arith.constant 256 : index
    %30 = vector.load %arg11[%c0_27, %c256] : memref<16x512xf32, #tpu.memory_space<vmem>>, vector<8x256xf32>
    tpu.vector_store %arg11[%c0_27, %c256], %26 {strides = array<i32>} : memref<16x512xf32, #tpu.memory_space<vmem>>, vector<8x256xf32>,
    %c8_28 = arith.constant 8 : index
    %c256_29 = arith.constant 256 : index
    %31 = vector.load %arg11[%c8_28, %c256_29] : memref<16x512xf32, #tpu.memory_space<vmem>>, vector<8x256xf32>
    tpu.vector_store %arg11[%c8_28, %c256_29], %29 {strides = array<i32>} : memref<16x512xf32, #tpu.memory_space<vmem>>, vector<8x256xf32>,
    %c0_30 = arith.constant 0 : index
    %c256_31 = arith.constant 256 : index
    %32 = vector.load %arg11[%c0_30, %c256_31] : memref<16x512xf32, #tpu.memory_space<vmem>>, vector<16x256xf32>
    %cst_32 = arith.constant dense<0.000000e+00> : vector<16xf32>
    %33 = vector.multi_reduction <add>, %32, %cst_32 [1] : vector<16x256xf32> to vector<16xf32>
    %34 = vector.shape_cast %33 : vector<16xf32> to vector<16x1xf32>
    %cst_33 = arith.constant 2.560000e+02 : f32
    %35 = vector.broadcast %cst_33 : f32 to vector<16x1xf32>
    %36 = arith.divf %34, %35 : vector<16x1xf32>
    %cst_34 = arith.constant dense<0.000000e+00> : vector<8x1xf32>
    %37 = tpu.matmul %1, %36, %cst_34 {dimension_numbers = #tpu.dot_dimension_numbers<[1], [0], [0], [1], [0, 0, 1, 1], [], []>} : vector<8x16xf32>, vector<16x1xf32>, vector<8x1xf32> -> vector<8x1xf32>
    %38 = arith.negf %37 : vector<8x1xf32>
    %39 = math.exp %38 : vector<8x1xf32>
    %cst_35 = arith.constant 1.000000e+00 : f32
    %40 = vector.broadcast %cst_35 : f32 to vector<8x1xf32>
    %41 = arith.addf %40, %39 : vector<8x1xf32>
    %42 = arith.divf %40, %41 : vector<8x1xf32>
    %43 = vector.broadcast %42 : vector<8x1xf32> to vector<8x256xf32>
    %44 = arith.mulf %26, %43 : vector<8x256xf32>
    %cst_36 = arith.constant 0.000000e+00 : f32
    %45 = vector.broadcast %cst_36 : f32 to vector<8x256xf32>
    %46 = arith.maximumf %44, %45 : vector<8x256xf32>
    %c0_37 = arith.constant 0 : index
    %c256_38 = arith.constant 256 : index
    %47 = vector.load %arg11[%c0_37, %c256_38] : memref<16x512xf32, #tpu.memory_space<vmem>>, vector<8x256xf32>
    tpu.vector_store %arg11[%c0_37, %c256_38], %46 {strides = array<i32>} : memref<16x512xf32, #tpu.memory_space<vmem>>, vector<8x256xf32>,
    %c0_39 = arith.constant 0 : index
    %c0_40 = arith.constant 0 : index
    %48 = vector.load %arg11[%c0_39, %c0_40] : memref<16x512xf32, #tpu.memory_space<vmem>>, vector<16x512xf32>
    %c17_i32 = arith.constant 17 : i32
    %49 = tpu.dynamic_rotate %48 by %c17_i32 dim 1 : vector<16x512xf32>, i32 -> vector<16x512xf32>
    %c0_41 = arith.constant 0 : index
    %c0_42 = arith.constant 0 : index
    %50 = vector.load %arg5[%c0_41, %c0_42] : memref<9x512xf32, #tpu.memory_space<vmem>>, vector<1x512xf32>
    %51 = vector.shape_cast %50 : vector<1x512xf32> to vector<512xf32>
    %52 = vector.shape_cast %51 : vector<512xf32> to vector<1x512xf32>
    %53 = vector.broadcast %52 : vector<1x512xf32> to vector<16x512xf32>
    %54 = arith.mulf %49, %53 : vector<16x512xf32>
    %55 = arith.truncf %54 : vector<16x512xf32> to vector<16x512xbf16>
    %c0_43 = arith.constant 0 : index
    %c0_44 = arith.constant 0 : index
    %56 = vector.load %arg12[%c0_43, %c0_44] : memref<144x512xbf16, #tpu.memory_space<vmem>>, vector<16x512xbf16>
    tpu.vector_store %arg12[%c0_43, %c0_44], %55 {strides = array<i32>} : memref<144x512xbf16, #tpu.memory_space<vmem>>, vector<16x512xbf16>,
    %c16_i32 = arith.constant 16 : i32
    %57 = tpu.dynamic_rotate %48 by %c16_i32 dim 1 : vector<16x512xf32>, i32 -> vector<16x512xf32>
    %c1_45 = arith.constant 1 : index
    %c0_46 = arith.constant 0 : index
    %58 = vector.load %arg5[%c1_45, %c0_46] : memref<9x512xf32, #tpu.memory_space<vmem>>, vector<1x512xf32>
    %59 = vector.shape_cast %58 : vector<1x512xf32> to vector<512xf32>
    %60 = vector.shape_cast %59 : vector<512xf32> to vector<1x512xf32>
    %61 = vector.broadcast %60 : vector<1x512xf32> to vector<16x512xf32>
    %62 = arith.mulf %57, %61 : vector<16x512xf32>
    %63 = arith.truncf %62 : vector<16x512xf32> to vector<16x512xbf16>
    %c16 = arith.constant 16 : index
    %c0_47 = arith.constant 0 : index
    %64 = vector.load %arg12[%c16, %c0_47] : memref<144x512xbf16, #tpu.memory_space<vmem>>, vector<16x512xbf16>
    tpu.vector_store %arg12[%c16, %c0_47], %63 {strides = array<i32>} : memref<144x512xbf16, #tpu.memory_space<vmem>>, vector<16x512xbf16>,
    %c15_i32 = arith.constant 15 : i32
    %65 = tpu.dynamic_rotate %48 by %c15_i32 dim 1 : vector<16x512xf32>, i32 -> vector<16x512xf32>
    %c2 = arith.constant 2 : index
    %c0_48 = arith.constant 0 : index
    %66 = vector.load %arg5[%c2, %c0_48] : memref<9x512xf32, #tpu.memory_space<vmem>>, vector<1x512xf32>
    %67 = vector.shape_cast %66 : vector<1x512xf32> to vector<512xf32>
    %68 = vector.shape_cast %67 : vector<512xf32> to vector<1x512xf32>
    %69 = vector.broadcast %68 : vector<1x512xf32> to vector<16x512xf32>
    %70 = arith.mulf %65, %69 : vector<16x512xf32>
    %71 = arith.truncf %70 : vector<16x512xf32> to vector<16x512xbf16>
    %c32 = arith.constant 32 : index
    %c0_49 = arith.constant 0 : index
    %72 = vector.load %arg12[%c32, %c0_49] : memref<144x512xbf16, #tpu.memory_space<vmem>>, vector<16x512xbf16>
    tpu.vector_store %arg12[%c32, %c0_49], %71 {strides = array<i32>} : memref<144x512xbf16, #tpu.memory_space<vmem>>, vector<16x512xbf16>,
    %c1_i32 = arith.constant 1 : i32
    %73 = tpu.dynamic_rotate %48 by %c1_i32 dim 1 : vector<16x512xf32>, i32 -> vector<16x512xf32>
    %c3 = arith.constant 3 : index
    %c0_50 = arith.constant 0 : index
    %74 = vector.load %arg5[%c3, %c0_50] : memref<9x512xf32, #tpu.memory_space<vmem>>, vector<1x512xf32>
    %75 = vector.shape_cast %74 : vector<1x512xf32> to vector<512xf32>
    %76 = vector.shape_cast %75 : vector<512xf32> to vector<1x512xf32>
    %77 = vector.broadcast %76 : vector<1x512xf32> to vector<16x512xf32>
    %78 = arith.mulf %73, %77 : vector<16x512xf32>
    %79 = arith.truncf %78 : vector<16x512xf32> to vector<16x512xbf16>
    %c48 = arith.constant 48 : index
    %c0_51 = arith.constant 0 : index
    %80 = vector.load %arg12[%c48, %c0_51] : memref<144x512xbf16, #tpu.memory_space<vmem>>, vector<16x512xbf16>
    tpu.vector_store %arg12[%c48, %c0_51], %79 {strides = array<i32>} : memref<144x512xbf16, #tpu.memory_space<vmem>>, vector<16x512xbf16>,
    %81 = arith.truncf %48 : vector<16x512xf32> to vector<16x512xbf16>
    %c64 = arith.constant 64 : index
    %c0_52 = arith.constant 0 : index
    %82 = vector.load %arg12[%c64, %c0_52] : memref<144x512xbf16, #tpu.memory_space<vmem>>, vector<16x512xbf16>
    tpu.vector_store %arg12[%c64, %c0_52], %81 {strides = array<i32>} : memref<144x512xbf16, #tpu.memory_space<vmem>>, vector<16x512xbf16>,
    %c511_i32 = arith.constant 511 : i32
    %83 = tpu.dynamic_rotate %48 by %c511_i32 dim 1 : vector<16x512xf32>, i32 -> vector<16x512xf32>
    %c5 = arith.constant 5 : index
    %c0_53 = arith.constant 0 : index
    %84 = vector.load %arg5[%c5, %c0_53] : memref<9x512xf32, #tpu.memory_space<vmem>>, vector<1x512xf32>
    %85 = vector.shape_cast %84 : vector<1x512xf32> to vector<512xf32>
    %86 = vector.shape_cast %85 : vector<512xf32> to vector<1x512xf32>
    %87 = vector.broadcast %86 : vector<1x512xf32> to vector<16x512xf32>
    %88 = arith.mulf %83, %87 : vector<16x512xf32>
    %89 = arith.truncf %88 : vector<16x512xf32> to vector<16x512xbf16>
    %c80 = arith.constant 80 : index
    %c0_54 = arith.constant 0 : index
    %90 = vector.load %arg12[%c80, %c0_54] : memref<144x512xbf16, #tpu.memory_space<vmem>>, vector<16x512xbf16>
    tpu.vector_store %arg12[%c80, %c0_54], %89 {strides = array<i32>} : memref<144x512xbf16, #tpu.memory_space<vmem>>, vector<16x512xbf16>,
    %c497_i32 = arith.constant 497 : i32
    %91 = tpu.dynamic_rotate %48 by %c497_i32 dim 1 : vector<16x512xf32>, i32 -> vector<16x512xf32>
    %c6 = arith.constant 6 : index
    %c0_55 = arith.constant 0 : index
    %92 = vector.load %arg5[%c6, %c0_55] : memref<9x512xf32, #tpu.memory_space<vmem>>, vector<1x512xf32>
    %93 = vector.shape_cast %92 : vector<1x512xf32> to vector<512xf32>
    %94 = vector.shape_cast %93 : vector<512xf32> to vector<1x512xf32>
    %95 = vector.broadcast %94 : vector<1x512xf32> to vector<16x512xf32>
    %96 = arith.mulf %91, %95 : vector<16x512xf32>
    %97 = arith.truncf %96 : vector<16x512xf32> to vector<16x512xbf16>
    %c96 = arith.constant 96 : index
    %c0_56 = arith.constant 0 : index
    %98 = vector.load %arg12[%c96, %c0_56] : memref<144x512xbf16, #tpu.memory_space<vmem>>, vector<16x512xbf16>
    tpu.vector_store %arg12[%c96, %c0_56], %97 {strides = array<i32>} : memref<144x512xbf16, #tpu.memory_space<vmem>>, vector<16x512xbf16>,
    %c496_i32 = arith.constant 496 : i32
    %99 = tpu.dynamic_rotate %48 by %c496_i32 dim 1 : vector<16x512xf32>, i32 -> vector<16x512xf32>
    %c7 = arith.constant 7 : index
    %c0_57 = arith.constant 0 : index
    %100 = vector.load %arg5[%c7, %c0_57] : memref<9x512xf32, #tpu.memory_space<vmem>>, vector<1x512xf32>
    %101 = vector.shape_cast %100 : vector<1x512xf32> to vector<512xf32>
    %102 = vector.shape_cast %101 : vector<512xf32> to vector<1x512xf32>
    %103 = vector.broadcast %102 : vector<1x512xf32> to vector<16x512xf32>
    %104 = arith.mulf %99, %103 : vector<16x512xf32>
    %105 = arith.truncf %104 : vector<16x512xf32> to vector<16x512xbf16>
    %c112 = arith.constant 112 : index
    %c0_58 = arith.constant 0 : index
    %106 = vector.load %arg12[%c112, %c0_58] : memref<144x512xbf16, #tpu.memory_space<vmem>>, vector<16x512xbf16>
    tpu.vector_store %arg12[%c112, %c0_58], %105 {strides = array<i32>} : memref<144x512xbf16, #tpu.memory_space<vmem>>, vector<16x512xbf16>,
    %c495_i32 = arith.constant 495 : i32
    %107 = tpu.dynamic_rotate %48 by %c495_i32 dim 1 : vector<16x512xf32>, i32 -> vector<16x512xf32>
    %c8_59 = arith.constant 8 : index
    %c0_60 = arith.constant 0 : index
    %108 = vector.load %arg5[%c8_59, %c0_60] : memref<9x512xf32, #tpu.memory_space<vmem>>, vector<1x512xf32>
    %109 = vector.shape_cast %108 : vector<1x512xf32> to vector<512xf32>
    %110 = vector.shape_cast %109 : vector<512xf32> to vector<1x512xf32>
    %111 = vector.broadcast %110 : vector<1x512xf32> to vector<16x512xf32>
    %112 = arith.mulf %107, %111 : vector<16x512xf32>
    %113 = arith.truncf %112 : vector<16x512xf32> to vector<16x512xbf16>
    %c128 = arith.constant 128 : index
    %c0_61 = arith.constant 0 : index
    %114 = vector.load %arg12[%c128, %c0_61] : memref<144x512xbf16, #tpu.memory_space<vmem>>, vector<16x512xbf16>
    tpu.vector_store %arg12[%c128, %c0_61], %113 {strides = array<i32>} : memref<144x512xbf16, #tpu.memory_space<vmem>>, vector<16x512xbf16>,
    %c0_62 = arith.constant 0 : index
    %c0_63 = arith.constant 0 : index
    %115 = vector.load %arg6[%c0_62, %c0_63] : memref<16x144xbf16, #tpu.memory_space<vmem>>, vector<16x144xbf16>
    %c0_64 = arith.constant 0 : index
    %c0_65 = arith.constant 0 : index
    %116 = vector.load %arg12[%c0_64, %c0_65] : memref<144x512xbf16, #tpu.memory_space<vmem>>, vector<144x512xbf16>
    %cst_66 = arith.constant dense<0.000000e+00> : vector<16x512xf32>
    %117 = tpu.matmul %115, %116, %cst_66 {dimension_numbers = #tpu.dot_dimension_numbers<[1], [0], [0], [1], [0, 0, 1, 1], [], []>} : vector<16x144xbf16>, vector<144x512xbf16>, vector<16x512xf32> -> vector<16x512xf32>
    %c0_67 = arith.constant 0 : index
    %c0_68 = arith.constant 0 : index
    %118 = vector.load %arg7[%c0_67, %c0_68] : memref<16x1xf32, #tpu.memory_space<vmem>>, vector<16x1xf32>
    %119 = vector.broadcast %118 : vector<16x1xf32> to vector<16x512xf32>
    %120 = arith.addf %117, %119 : vector<16x512xf32>
    %cst_69 = arith.constant 0.000000e+00 : f32
    %121 = vector.broadcast %cst_69 : f32 to vector<16x512xf32>
    %122 = arith.maximumf %120, %121 : vector<16x512xf32>
    %c0_70 = arith.constant 0 : index
    %c0_71 = arith.constant 0 : index
    %123 = vector.load %arg11[%c0_70, %c0_71] : memref<16x512xf32, #tpu.memory_space<vmem>>, vector<16x512xf32>
    tpu.vector_store %arg11[%c0_70, %c0_71], %122 {strides = array<i32>} : memref<16x512xf32, #tpu.memory_space<vmem>>, vector<16x512xf32>,
    %c0_72 = arith.constant 0 : index
    %c0_73 = arith.constant 0 : index
    %124 = vector.load %arg11[%c0_72, %c0_73] : memref<16x512xf32, #tpu.memory_space<vmem>>, vector<16x512xf32>
    %c17_i32_74 = arith.constant 17 : i32
    %125 = tpu.dynamic_rotate %124 by %c17_i32_74 dim 1 : vector<16x512xf32>, i32 -> vector<16x512xf32>
    %c0_75 = arith.constant 0 : index
    %c0_76 = arith.constant 0 : index
    %126 = vector.load %arg5[%c0_75, %c0_76] : memref<9x512xf32, #tpu.memory_space<vmem>>, vector<1x512xf32>
    %127 = vector.shape_cast %126 : vector<1x512xf32> to vector<512xf32>
    %128 = vector.shape_cast %127 : vector<512xf32> to vector<1x512xf32>
    %129 = vector.broadcast %128 : vector<1x512xf32> to vector<16x512xf32>
    %130 = arith.mulf %125, %129 : vector<16x512xf32>
    %131 = arith.truncf %130 : vector<16x512xf32> to vector<16x512xbf16>
    %c0_77 = arith.constant 0 : index
    %c0_78 = arith.constant 0 : index
    %132 = vector.load %arg12[%c0_77, %c0_78] : memref<144x512xbf16, #tpu.memory_space<vmem>>, vector<16x512xbf16>
    tpu.vector_store %arg12[%c0_77, %c0_78], %131 {strides = array<i32>} : memref<144x512xbf16, #tpu.memory_space<vmem>>, vector<16x512xbf16>,
    %c16_i32_79 = arith.constant 16 : i32
    %133 = tpu.dynamic_rotate %124 by %c16_i32_79 dim 1 : vector<16x512xf32>, i32 -> vector<16x512xf32>
    %c1_80 = arith.constant 1 : index
    %c0_81 = arith.constant 0 : index
    %134 = vector.load %arg5[%c1_80, %c0_81] : memref<9x512xf32, #tpu.memory_space<vmem>>, vector<1x512xf32>
    %135 = vector.shape_cast %134 : vector<1x512xf32> to vector<512xf32>
    %136 = vector.shape_cast %135 : vector<512xf32> to vector<1x512xf32>
    %137 = vector.broadcast %136 : vector<1x512xf32> to vector<16x512xf32>
    %138 = arith.mulf %133, %137 : vector<16x512xf32>
    %139 = arith.truncf %138 : vector<16x512xf32> to vector<16x512xbf16>
    %c16_82 = arith.constant 16 : index
    %c0_83 = arith.constant 0 : index
    %140 = vector.load %arg12[%c16_82, %c0_83] : memref<144x512xbf16, #tpu.memory_space<vmem>>, vector<16x512xbf16>
    tpu.vector_store %arg12[%c16_82, %c0_83], %139 {strides = array<i32>} : memref<144x512xbf16, #tpu.memory_space<vmem>>, vector<16x512xbf16>,
    %c15_i32_84 = arith.constant 15 : i32
    %141 = tpu.dynamic_rotate %124 by %c15_i32_84 dim 1 : vector<16x512xf32>, i32 -> vector<16x512xf32>
    %c2_85 = arith.constant 2 : index
    %c0_86 = arith.constant 0 : index
    %142 = vector.load %arg5[%c2_85, %c0_86] : memref<9x512xf32, #tpu.memory_space<vmem>>, vector<1x512xf32>
    %143 = vector.shape_cast %142 : vector<1x512xf32> to vector<512xf32>
    %144 = vector.shape_cast %143 : vector<512xf32> to vector<1x512xf32>
    %145 = vector.broadcast %144 : vector<1x512xf32> to vector<16x512xf32>
    %146 = arith.mulf %141, %145 : vector<16x512xf32>
    %147 = arith.truncf %146 : vector<16x512xf32> to vector<16x512xbf16>
    %c32_87 = arith.constant 32 : index
    %c0_88 = arith.constant 0 : index
    %148 = vector.load %arg12[%c32_87, %c0_88] : memref<144x512xbf16, #tpu.memory_space<vmem>>, vector<16x512xbf16>
    tpu.vector_store %arg12[%c32_87, %c0_88], %147 {strides = array<i32>} : memref<144x512xbf16, #tpu.memory_space<vmem>>, vector<16x512xbf16>,
    %c1_i32_89 = arith.constant 1 : i32
    %149 = tpu.dynamic_rotate %124 by %c1_i32_89 dim 1 : vector<16x512xf32>, i32 -> vector<16x512xf32>
    %c3_90 = arith.constant 3 : index
    %c0_91 = arith.constant 0 : index
    %150 = vector.load %arg5[%c3_90, %c0_91] : memref<9x512xf32, #tpu.memory_space<vmem>>, vector<1x512xf32>
    %151 = vector.shape_cast %150 : vector<1x512xf32> to vector<512xf32>
    %152 = vector.shape_cast %151 : vector<512xf32> to vector<1x512xf32>
    %153 = vector.broadcast %152 : vector<1x512xf32> to vector<16x512xf32>
    %154 = arith.mulf %149, %153 : vector<16x512xf32>
    %155 = arith.truncf %154 : vector<16x512xf32> to vector<16x512xbf16>
    %c48_92 = arith.constant 48 : index
    %c0_93 = arith.constant 0 : index
    %156 = vector.load %arg12[%c48_92, %c0_93] : memref<144x512xbf16, #tpu.memory_space<vmem>>, vector<16x512xbf16>
    tpu.vector_store %arg12[%c48_92, %c0_93], %155 {strides = array<i32>} : memref<144x512xbf16, #tpu.memory_space<vmem>>, vector<16x512xbf16>,
    %157 = arith.truncf %124 : vector<16x512xf32> to vector<16x512xbf16>
    %c64_94 = arith.constant 64 : index
    %c0_95 = arith.constant 0 : index
    %158 = vector.load %arg12[%c64_94, %c0_95] : memref<144x512xbf16, #tpu.memory_space<vmem>>, vector<16x512xbf16>
    tpu.vector_store %arg12[%c64_94, %c0_95], %157 {strides = array<i32>} : memref<144x512xbf16, #tpu.memory_space<vmem>>, vector<16x512xbf16>,
    %c511_i32_96 = arith.constant 511 : i32
    %159 = tpu.dynamic_rotate %124 by %c511_i32_96 dim 1 : vector<16x512xf32>, i32 -> vector<16x512xf32>
    %c5_97 = arith.constant 5 : index
    %c0_98 = arith.constant 0 : index
    %160 = vector.load %arg5[%c5_97, %c0_98] : memref<9x512xf32, #tpu.memory_space<vmem>>, vector<1x512xf32>
    %161 = vector.shape_cast %160 : vector<1x512xf32> to vector<512xf32>
    %162 = vector.shape_cast %161 : vector<512xf32> to vector<1x512xf32>
    %163 = vector.broadcast %162 : vector<1x512xf32> to vector<16x512xf32>
    %164 = arith.mulf %159, %163 : vector<16x512xf32>
    %165 = arith.truncf %164 : vector<16x512xf32> to vector<16x512xbf16>
    %c80_99 = arith.constant 80 : index
    %c0_100 = arith.constant 0 : index
    %166 = vector.load %arg12[%c80_99, %c0_100] : memref<144x512xbf16, #tpu.memory_space<vmem>>, vector<16x512xbf16>
    tpu.vector_store %arg12[%c80_99, %c0_100], %165 {strides = array<i32>} : memref<144x512xbf16, #tpu.memory_space<vmem>>, vector<16x512xbf16>,
    %c497_i32_101 = arith.constant 497 : i32
    %167 = tpu.dynamic_rotate %124 by %c497_i32_101 dim 1 : vector<16x512xf32>, i32 -> vector<16x512xf32>
    %c6_102 = arith.constant 6 : index
    %c0_103 = arith.constant 0 : index
    %168 = vector.load %arg5[%c6_102, %c0_103] : memref<9x512xf32, #tpu.memory_space<vmem>>, vector<1x512xf32>
    %169 = vector.shape_cast %168 : vector<1x512xf32> to vector<512xf32>
    %170 = vector.shape_cast %169 : vector<512xf32> to vector<1x512xf32>
    %171 = vector.broadcast %170 : vector<1x512xf32> to vector<16x512xf32>
    %172 = arith.mulf %167, %171 : vector<16x512xf32>
    %173 = arith.truncf %172 : vector<16x512xf32> to vector<16x512xbf16>
    %c96_104 = arith.constant 96 : index
    %c0_105 = arith.constant 0 : index
    %174 = vector.load %arg12[%c96_104, %c0_105] : memref<144x512xbf16, #tpu.memory_space<vmem>>, vector<16x512xbf16>
    tpu.vector_store %arg12[%c96_104, %c0_105], %173 {strides = array<i32>} : memref<144x512xbf16, #tpu.memory_space<vmem>>, vector<16x512xbf16>,
    %c496_i32_106 = arith.constant 496 : i32
    %175 = tpu.dynamic_rotate %124 by %c496_i32_106 dim 1 : vector<16x512xf32>, i32 -> vector<16x512xf32>
    %c7_107 = arith.constant 7 : index
    %c0_108 = arith.constant 0 : index
    %176 = vector.load %arg5[%c7_107, %c0_108] : memref<9x512xf32, #tpu.memory_space<vmem>>, vector<1x512xf32>
    %177 = vector.shape_cast %176 : vector<1x512xf32> to vector<512xf32>
    %178 = vector.shape_cast %177 : vector<512xf32> to vector<1x512xf32>
    %179 = vector.broadcast %178 : vector<1x512xf32> to vector<16x512xf32>
    %180 = arith.mulf %175, %179 : vector<16x512xf32>
    %181 = arith.truncf %180 : vector<16x512xf32> to vector<16x512xbf16>
    %c112_109 = arith.constant 112 : index
    %c0_110 = arith.constant 0 : index
    %182 = vector.load %arg12[%c112_109, %c0_110] : memref<144x512xbf16, #tpu.memory_space<vmem>>, vector<16x512xbf16>
    tpu.vector_store %arg12[%c112_109, %c0_110], %181 {strides = array<i32>} : memref<144x512xbf16, #tpu.memory_space<vmem>>, vector<16x512xbf16>,
    %c495_i32_111 = arith.constant 495 : i32
    %183 = tpu.dynamic_rotate %124 by %c495_i32_111 dim 1 : vector<16x512xf32>, i32 -> vector<16x512xf32>
    %c8_112 = arith.constant 8 : index
    %c0_113 = arith.constant 0 : index
    %184 = vector.load %arg5[%c8_112, %c0_113] : memref<9x512xf32, #tpu.memory_space<vmem>>, vector<1x512xf32>
    %185 = vector.shape_cast %184 : vector<1x512xf32> to vector<512xf32>
    %186 = vector.shape_cast %185 : vector<512xf32> to vector<1x512xf32>
    %187 = vector.broadcast %186 : vector<1x512xf32> to vector<16x512xf32>
    %188 = arith.mulf %183, %187 : vector<16x512xf32>
    %189 = arith.truncf %188 : vector<16x512xf32> to vector<16x512xbf16>
    %c128_114 = arith.constant 128 : index
    %c0_115 = arith.constant 0 : index
    %190 = vector.load %arg12[%c128_114, %c0_115] : memref<144x512xbf16, #tpu.memory_space<vmem>>, vector<16x512xbf16>
    tpu.vector_store %arg12[%c128_114, %c0_115], %189 {strides = array<i32>} : memref<144x512xbf16, #tpu.memory_space<vmem>>, vector<16x512xbf16>,
    %c0_116 = arith.constant 0 : index
    %c0_117 = arith.constant 0 : index
    %191 = vector.load %arg8[%c0_116, %c0_117] : memref<16x144xbf16, #tpu.memory_space<vmem>>, vector<16x144xbf16>
    %c0_118 = arith.constant 0 : index
    %c0_119 = arith.constant 0 : index
    %192 = vector.load %arg12[%c0_118, %c0_119] : memref<144x512xbf16, #tpu.memory_space<vmem>>, vector<144x512xbf16>
    %cst_120 = arith.constant dense<0.000000e+00> : vector<16x512xf32>
    %193 = tpu.matmul %191, %192, %cst_120 {dimension_numbers = #tpu.dot_dimension_numbers<[1], [0], [0], [1], [0, 0, 1, 1], [], []>} : vector<16x144xbf16>, vector<144x512xbf16>, vector<16x512xf32> -> vector<16x512xf32>
    %c0_121 = arith.constant 0 : index
    %c0_122 = arith.constant 0 : index
    %194 = vector.load %arg9[%c0_121, %c0_122] : memref<16x1xf32, #tpu.memory_space<vmem>>, vector<16x1xf32>
    %195 = vector.broadcast %194 : vector<16x1xf32> to vector<16x512xf32>
    %196 = arith.addf %193, %195 : vector<16x512xf32>
    %cst_123 = arith.constant 0.000000e+00 : f32
    %197 = vector.broadcast %cst_123 : f32 to vector<16x512xf32>
    %198 = arith.maximumf %196, %197 : vector<16x512xf32>
    %199 = vector.extract_strided_slice %198 {offsets = [0, 0], sizes = [16, 256], strides = [1, 1]} : vector<16x512xf32> to vector<16x256xf32>
    %c0_124 = arith.constant 0 : index
    %c0_125 = arith.constant 0 : index
    %c0_126 = arith.constant 0 : index
    %200 = vector.load %arg10[%c0_124, %c0_125, %c0_126] : memref<2x16x256xf32, #tpu.memory_space<vmem>>, vector<1x16x256xf32>
    %201 = vector.shape_cast %200 : vector<1x16x256xf32> to vector<16x256xf32>
    %202 = vector.shape_cast %199 : vector<16x256xf32> to vector<1x16x256xf32>
    tpu.vector_store %arg10[%c0_124, %c0_125, %c0_126], %202 {strides = array<i32>} : memref<2x16x256xf32, #tpu.memory_space<vmem>>, vector<1x16x256xf32>,
    %203 = vector.extract_strided_slice %198 {offsets = [0, 256], sizes = [16, 256], strides = [1, 1]} : vector<16x512xf32> to vector<16x256xf32>
    %c1_127 = arith.constant 1 : index
    %c0_128 = arith.constant 0 : index
    %c0_129 = arith.constant 0 : index
    %204 = vector.load %arg10[%c1_127, %c0_128, %c0_129] : memref<2x16x256xf32, #tpu.memory_space<vmem>>, vector<1x16x256xf32>
    %205 = vector.shape_cast %204 : vector<1x16x256xf32> to vector<16x256xf32>
    %206 = vector.shape_cast %203 : vector<16x256xf32> to vector<1x16x256xf32>
    tpu.vector_store %arg10[%c1_127, %c0_128, %c0_129], %206 {strides = array<i32>} : memref<2x16x256xf32, #tpu.memory_space<vmem>>, vector<1x16x256xf32>,
    return
  }
  func.func @transform_0(%arg0: i32) -> (i32, i32, i32) {
    %c0_i32 = arith.constant 0 : i32
    %c0_i32_0 = arith.constant 0 : i32
    %c0_i32_1 = arith.constant 0 : i32
    return %arg0, %c0_i32, %c0_i32_0 : i32, i32, i32
  }
  func.func @transform_1(%arg0: i32) -> (i32, i32, i32) {
    %c0_i32 = arith.constant 0 : i32
    %c0_i32_0 = arith.constant 0 : i32
    %c0_i32_1 = arith.constant 0 : i32
    return %arg0, %c0_i32, %c0_i32_0 : i32, i32, i32
  }
  func.func @transform_2(%arg0: i32) -> (i32, i32) {
    %c0_i32 = arith.constant 0 : i32
    %c0_i32_0 = arith.constant 0 : i32
    %c0_i32_1 = arith.constant 0 : i32
    return %c0_i32, %c0_i32_0 : i32, i32
  }
  func.func @transform_3(%arg0: i32) -> (i32, i32) {
    %c0_i32 = arith.constant 0 : i32
    %c0_i32_0 = arith.constant 0 : i32
    %c0_i32_1 = arith.constant 0 : i32
    return %c0_i32, %c0_i32_0 : i32, i32
  }
  func.func @transform_4(%arg0: i32) -> (i32, i32) {
    %c0_i32 = arith.constant 0 : i32
    %c0_i32_0 = arith.constant 0 : i32
    %c0_i32_1 = arith.constant 0 : i32
    return %c0_i32, %c0_i32_0 : i32, i32
  }
  func.func @transform_5(%arg0: i32) -> (i32, i32) {
    %c0_i32 = arith.constant 0 : i32
    %c0_i32_0 = arith.constant 0 : i32
    %c0_i32_1 = arith.constant 0 : i32
    return %c0_i32, %c0_i32_0 : i32, i32
  }
  func.func @transform_6(%arg0: i32) -> (i32, i32) {
    %c0_i32 = arith.constant 0 : i32
    %c0_i32_0 = arith.constant 0 : i32
    %c0_i32_1 = arith.constant 0 : i32
    return %c0_i32, %c0_i32_0 : i32, i32
  }
  func.func @transform_7(%arg0: i32) -> (i32, i32) {
    %c0_i32 = arith.constant 0 : i32
    %c0_i32_0 = arith.constant 0 : i32
    %c0_i32_1 = arith.constant 0 : i32
    return %c0_i32, %c0_i32_0 : i32, i32
  }
  func.func @transform_8(%arg0: i32) -> (i32, i32) {
    %c0_i32 = arith.constant 0 : i32
    %c0_i32_0 = arith.constant 0 : i32
    %c0_i32_1 = arith.constant 0 : i32
    return %c0_i32, %c0_i32_0 : i32, i32
  }
  func.func @transform_9(%arg0: i32) -> (i32, i32, i32) {
    %c0_i32 = arith.constant 0 : i32
    %c0_i32_0 = arith.constant 0 : i32
    %c0_i32_1 = arith.constant 0 : i32
    return %arg0, %c0_i32, %c0_i32_0 : i32, i32, i32
  }
}

</mosaic_0001>

<llo_original>
// kernel: upblock_attention_high_forward.1
$region0: #{upblock_attention_high_forward.1}
  #allocation0 [shape = 'u32[]', space=smem, size = 0x4, offset = 0x4, fixed_abs, tag = 'smem constant byte address 0x4 - core index']
  #allocation1 [shape = 'u32[144,128]{1,0:T(1,128)}', space=vmem, size = 0x12000, scoped, tag = 'internal scratch']
  #allocation2 [shape = 'f32[16,512]{1,0:T(8,128)}', space=vmem, size = 0x8000, scoped, tag = 'scratch operand']
  #allocation3 [shape = 'bf16[144,512]{1,0:T(8,128)(2,1)}', space=vmem, size = 0x24000, scoped, tag = 'scratch operand']
  %s0 = inlined_call_operand.vmem [shape: f32[2,8,64], index: 0, kind: input, shape index: {}]
  %s1 = inlined_call_operand.vmem [shape: f32[2,8,256], index: 1, kind: input, shape index: {}]
  %s2 = inlined_call_operand.vmem [shape: f32[64,256], index: 2, kind: input, shape index: {}]
  %s3 = inlined_call_operand.vmem [shape: f32[8,16], index: 3, kind: input, shape index: {}]
  %s4 = inlined_call_operand.vmem [shape: f32[9,512], index: 4, kind: input, shape index: {}]
  %s5 = inlined_call_operand.vmem [shape: bf16[16,144], index: 5, kind: input, shape index: {}]
  %s6 = inlined_call_operand.vmem [shape: f32[16,1], index: 6, kind: input, shape index: {}]
  %s7 = inlined_call_operand.vmem [shape: bf16[16,144], index: 7, kind: input, shape index: {}]
  %s8 = inlined_call_operand.vmem [shape: f32[16,1], index: 8, kind: input, shape index: {}]
  %s9 = inlined_call_operand.vmem [shape: f32[2,16,256], index: 9, kind: output, shape index: {}]
  %s10 = sld [smem:[#allocation0]]
  $region46: #{upblock_attention_high_forward.1} parent=0
    _
  %s12 = ssub.s32 1, %s10
  %s13 = scalar_select 0, %s12, %s10
  // Predicated region
  $region2: #{upblock_attention_high_forward.1} parent=0 // pred_check
    _
  $region3: #{upblock_attention_high_forward.1} parent=0 // pred_check_branch
    %15 = sbr.rel (0) target = $region5
  $region4: #{upblock_attention_high_forward.1} parent=0 // pred_region
    _
  $region5: #{upblock_attention_high_forward.1} parent=0 // pred_fallthru
    _
  // Predicated region
  $region6: #{upblock_attention_high_forward.1} parent=0 // pred_check
    _
  $region7: #{upblock_attention_high_forward.1} parent=0 // pred_check_branch
    %17 = sbr.rel (0) target = $region9
  $region8: #{upblock_attention_high_forward.1} parent=0 // pred_region
    _
  $region9: #{upblock_attention_high_forward.1} parent=0 // pred_fallthru
    _
  // Predicated region
  $region10: #{upblock_attention_high_forward.1} parent=0 // pred_check
    _
  $region11: #{upblock_attention_high_forward.1} parent=0 // pred_check_branch
    %19 = sbr.rel (0) target = $region13
  $region12: #{upblock_attention_high_forward.1} parent=0 // pred_region
    _
  $region13: #{upblock_attention_high_forward.1} parent=0 // pred_fallthru
    _
  // Predicated region
  $region14: #{upblock_attention_high_forward.1} parent=0 // pred_check
    _
  $region15: #{upblock_attention_high_forward.1} parent=0 // pred_check_branch
    %21 = sbr.rel (0) target = $region17
  $region16: #{upblock_attention_high_forward.1} parent=0 // pred_region
    _
  $region17: #{upblock_attention_high_forward.1} parent=0 // pred_fallthru
    _
  // Predicated region
  $region18: #{upblock_attention_high_forward.1} parent=0 // pred_check
    _
  $region19: #{upblock_attention_high_forward.1} parent=0 // pred_check_branch
    %23 = sbr.rel (0) target = $region21
  $region20: #{upblock_attention_high_forward.1} parent=0 // pred_region
    _
  $region21: #{upblock_attention_high_forward.1} parent=0 // pred_fallthru
    _
  // Predicated region
  $region22: #{upblock_attention_high_forward.1} parent=0 // pred_check
    _
  $region23: #{upblock_attention_high_forward.1} parent=0 // pred_check_branch
    %25 = sbr.rel (0) target = $region25
  $region24: #{upblock_attention_high_forward.1} parent=0 // pred_region
    _
  $region25: #{upblock_attention_high_forward.1} parent=0 // pred_fallthru
    _
  // Predicated region
  $region26: #{upblock_attention_high_forward.1} parent=0 // pred_check
    _
  $region27: #{upblock_attention_high_forward.1} parent=0 // pred_check_branch
    %27 = sbr.rel (0) target = $region29
  $region28: #{upblock_attention_high_forward.1} parent=0 // pred_region
    _
  $region29: #{upblock_attention_high_forward.1} parent=0 // pred_fallthru
    _
  // Predicated region
  $region30: #{upblock_attention_high_forward.1} parent=0 // pred_check
    _
  $region31: #{upblock_attention_high_forward.1} parent=0 // pred_check_branch
    %29 = sbr.rel (0) target = $region33
  $region32: #{upblock_attention_high_forward.1} parent=0 // pred_region
    _
  $region33: #{upblock_attention_high_forward.1} parent=0 // pred_fallthru
    _
  // Predicated region
  $region34: #{upblock_attention_high_forward.1} parent=0 // pred_check
    _
  $region35: #{upblock_attention_high_forward.1} parent=0 // pred_check_branch
    %31 = sbr.rel (0) target = $region37
  $region36: #{upblock_attention_high_forward.1} parent=0 // pred_region
    _
  $region37: #{upblock_attention_high_forward.1} parent=0 // pred_fallthru
    _
  %v33 = vld [vmem:[%s2] sm:$0xff]
  %v34 = vld [vmem:[%s2 + $0x8] sm:$0xff]
  %v35 = vld [vmem:[%s2 + $0x10] sm:$0xff]
  %v36 = vld [vmem:[%s2 + $0x18] sm:$0xff]
  %v37 = vld [vmem:[%s2 + $0x20] sm:$0xff]
  %v38 = vld [vmem:[%s2 + $0x28] sm:$0xff]
  %v39 = vld [vmem:[%s2 + $0x30] sm:$0xff]
  %v40 = vld [vmem:[%s2 + $0x38] sm:$0xff]
  %v41 = vld [vmem:[%s2 + $0x40] sm:$0xff]
  %v42 = vld [vmem:[%s2 + $0x48] sm:$0xff]
  %v43 = vld [vmem:[%s2 + $0x50] sm:$0xff]
  %v44 = vld [vmem:[%s2 + $0x58] sm:$0xff]
  %v45 = vld [vmem:[%s2 + $0x60] sm:$0xff]
  %v46 = vld [vmem:[%s2 + $0x68] sm:$0xff]
  %v47 = vld [vmem:[%s2 + $0x70] sm:$0xff]
  %v48 = vld [vmem:[%s2 + $0x78] sm:$0xff]
  %v49 = vld [vmem:[%s3] sm:$0xff]
  %v50 = vld [vmem:[%s1] sm:$0xff]
  %v51 = vld [vmem:[%s1 + $0x8] sm:$0xff]
  %v52 = vld [vmem:[%s0] sm:$0xff]
  %vm53 = vcmask 523264
  %v55 = vsel %vm53, %v52, 0
  %57 = vmatprep.subr.mxu0 0.0
  %58 = vmatpush1.msra.mxu0 0.0
  %59 = vmatprep.subr.mxu0 0.0
  %60 = vmatpush1.msra.mxu0 0.0
  %61 = vmatprep.subr.mxu0 0.0
  %62 = vmatpush1.msra.mxu0 0.0
  %63 = vmatprep.subr.mxu0 0.0
  %64 = vmatpush1.msra.mxu0 0.0
  %65 = vmatprep.subr.mxu0 0.0
  %66 = vmatpush1.msra.mxu0 0.0
  %67 = vmatprep.subr.mxu0 0.0
  %68 = vmatpush1.msra.mxu0 0.0
  %69 = vmatprep.subr.mxu0 0.0
  %70 = vmatpush1.msra.mxu0 0.0
  %71 = vmatprep.subr.mxu0 0.0
  %72 = vmatpush1.msra.mxu0 0.0
  %73 = vmatprep.subr.mxu0 %v48
  %74 = vmatpush1.msra.mxu0 %v47
  %75 = vmatprep.subr.mxu0 %v46
  %76 = vmatpush1.msra.mxu0 %v45
  %77 = vmatprep.subr.mxu0 %v44
  %78 = vmatpush1.msra.mxu0 %v43
  %79 = vmatprep.subr.mxu0 %v42
  %80 = vmatpush1.msra.mxu0 %v41
  %81 = vmatprep.subr.mxu0 %v40
  %82 = vmatpush1.msra.mxu0 %v39
  %83 = vmatprep.subr.mxu0 %v38
  %84 = vmatpush1.msra.mxu0 %v37
  %85 = vmatprep.subr.mxu0 %v36
  %86 = vmatpush1.msra.mxu0 %v35
  %87 = vmatprep.subr.mxu0 %v34
  %88 = vmatpush1.msra.mxu0 %v33
  %89 = vmatprep.subr.mxu0 0.0
  %90 = vmatpush2.msra.mxu0 0.0
  %91 = vmatprep.subr.mxu0 0.0
  %92 = vmatpush2.msra.mxu0 0.0
  %93 = vmatprep.subr.mxu0 0.0
  %94 = vmatpush2.msra.mxu0 0.0
  %95 = vmatprep.subr.mxu0 0.0
  %96 = vmatpush2.msra.mxu0 0.0
  %97 = vmatprep.subr.mxu0 0.0
  %98 = vmatpush2.msra.mxu0 0.0
  %99 = vmatprep.subr.mxu0 0.0
  %100 = vmatpush2.msra.mxu0 0.0
  %101 = vmatprep.subr.mxu0 0.0
  %102 = vmatpush2.msra.mxu0 0.0
  %103 = vmatprep.subr.mxu0 0.0
  %104 = vmatpush2.msra.mxu0 0.0
  %105 = vmatprep.subr.mxu0 0.0
  %106 = vmatpush2.msra.mxu0 0.0
  %107 = vmatprep.subr.mxu0 0.0
  %108 = vmatpush2.msra.mxu0 0.0
  %109 = vmatprep.subr.mxu0 0.0
  %110 = vmatpush2.msra.mxu0 0.0
  %111 = vmatprep.subr.mxu0 0.0
  %112 = vmatpush2.msra.mxu0 0.0
  %113 = vmatprep.subr.mxu0 0.0
  %114 = vmatpush2.msra.mxu0 0.0
  %115 = vmatprep.subr.mxu0 0.0
  %116 = vmatpush2.msra.mxu0 0.0
  %117 = vmatprep.subr.mxu0 0.0
  %118 = vmatpush2.msra.mxu0 0.0
  %119 = vmatprep.subr.mxu0 0.0
  %120 = vmatpush2.msra.mxu0 0.0
  %121 = vmatprep.mubr.f32.mxu0 0.0
  %122 = vmatmul.mubr.f32.gmra.mxu0 %v55
  %v123 = vpop.f32.mrf.mxu0
  %v124 = vadd.f32 0.0, %v123
  %v125 = vpop.f32.mrf.mxu0
  %v126 = vadd.f32 0.0, %v125
  %127 = vdwg.mxu0
  %128 = vst [vmem:[#allocation2] sm:$0xff] %v50
  %129 = vst [vmem:[#allocation2 + $0x8] sm:$0xff] %v51
  %130 = vst [vmem:[#allocation2 + $0x20] sm:$0xff] %v124
  %131 = vst [vmem:[#allocation2 + $0x28] sm:$0xff] %v126
  %v132 = vld [vmem:[#allocation2] sm:$0xff]
  %v133 = vld [vmem:[#allocation2 + $0x8] sm:$0xff]
  %v134 = vld [vmem:[#allocation2 + $0x20] sm:$0xff]
  %v135 = vld [vmem:[#allocation2 + $0x28] sm:$0xff]
  %v136 = vadd.f32 %v132, %v133
  %137 = vadd.xlane.f32.xlu0 %v136
  %v138 = vpop.xlane.xlu0 %137
  %v139 = vadd.f32 %v134, %v135
  %140 = vadd.xlane.f32.xlu0 %v139
  %v141 = vpop.xlane.xlu0 %140
  %v142 = vrcp.pop 256.0
  %v143 = vmul.f32 %v138, %v142
  %v144 = vmul.f32 %v141, %v142
  %vm145 = vcmask 130048
  %v147 = vsel %vm145, %v49, 0
  %149 = vmatprep.subr.mxu0 0.0
  %150 = vmatpush1.msra.mxu0 0.0
  %151 = vmatprep.subr.mxu0 0.0
  %152 = vmatpush1.msra.mxu0 0.0
  %153 = vmatprep.subr.mxu0 0.0
  %154 = vmatpush1.msra.mxu0 0.0
  %155 = vmatprep.subr.mxu0 0.0
  %156 = vmatpush1.msra.mxu0 0.0
  %157 = vmatprep.subr.mxu0 0.0
  %158 = vmatpush1.msra.mxu0 0.0
  %159 = vmatprep.subr.mxu0 0.0
  %160 = vmatpush1.msra.mxu0 0.0
  %161 = vmatprep.subr.mxu0 0.0
  %162 = vmatpush1.msra.mxu0 0.0
  %163 = vmatprep.subr.mxu0 0.0
  %164 = vmatpush1.msra.mxu0 0.0
  %165 = vmatprep.subr.mxu0 0.0
  %166 = vmatpush1.msra.mxu0 0.0
  %167 = vmatprep.subr.mxu0 0.0
  %168 = vmatpush1.msra.mxu0 0.0
  %169 = vmatprep.subr.mxu0 0.0
  %170 = vmatpush1.msra.mxu0 0.0
  %171 = vmatprep.subr.mxu0 0.0
  %172 = vmatpush1.msra.mxu0 0.0
  %173 = vmatprep.subr.mxu0 0.0
  %174 = vmatpush1.msra.mxu0 0.0
  %175 = vmatprep.subr.mxu0 0.0
  %176 = vmatpush1.msra.mxu0 0.0
  %177 = vmatprep.subr.mxu0 0.0
  %178 = vmatpush1.msra.mxu0 %v144
  %179 = vmatprep.subr.mxu0 0.0
  %180 = vmatpush1.msra.mxu0 %v143
  %181 = vmatprep.subr.mxu0 0.0
  %182 = vmatpush2.msra.mxu0 0.0
  %183 = vmatprep.subr.mxu0 0.0
  %184 = vmatpush2.msra.mxu0 0.0
  %185 = vmatprep.subr.mxu0 0.0
  %186 = vmatpush2.msra.mxu0 0.0
  %187 = vmatprep.subr.mxu0 0.0
  %188 = vmatpush2.msra.mxu0 0.0
  %189 = vmatprep.subr.mxu0 0.0
  %190 = vmatpush2.msra.mxu0 0.0
  %191 = vmatprep.subr.mxu0 0.0
  %192 = vmatpush2.msra.mxu0 0.0
  %193 = vmatprep.subr.mxu0 0.0
  %194 = vmatpush2.msra.mxu0 0.0
  %195 = vmatprep.subr.mxu0 0.0
  %196 = vmatpush2.msra.mxu0 0.0
  %197 = vmatprep.subr.mxu0 0.0
  %198 = vmatpush2.msra.mxu0 0.0
  %199 = vmatprep.subr.mxu0 0.0
  %200 = vmatpush2.msra.mxu0 0.0
  %201 = vmatprep.subr.mxu0 0.0
  %202 = vmatpush2.msra.mxu0 0.0
  %203 = vmatprep.subr.mxu0 0.0
  %204 = vmatpush2.msra.mxu0 0.0
  %205 = vmatprep.subr.mxu0 0.0
  %206 = vmatpush2.msra.mxu0 0.0
  %207 = vmatprep.subr.mxu0 0.0
  %208 = vmatpush2.msra.mxu0 0.0
  %209 = vmatprep.subr.mxu0 0.0
  %210 = vmatpush2.msra.mxu0 0.0
  %211 = vmatprep.subr.mxu0 0.0
  %212 = vmatpush2.msra.mxu0 0.0
  %213 = vmatprep.mubr.f32.mxu0 0.0
  %214 = vmatmul.mubr.f32.gmra.mxu0 %v147
  %v215 = vpop.f32.mrf.mxu0
  %v216 = vadd.f32 0.0, %v215
  %v217 = vpop.f32.mrf.mxu0
  %218 = vdwg.mxu0
  %v219 = vxor.u32 %v216, 2147483648
  %v220 = vmul.f32 %v219, 1.442695
  %v221 = vpow.pop %v220
  %v222 = vadd.f32 %v221, 1.0
  %v223 = vrcp.pop %v222
  %v224 = vmul.f32 1.0, %v223
  %226 = vset.pattern.permute.xlu0 0
  %227 = vperm.xlu0 %226, %v224
  %v228 = vpop.permute.xlu0 %227
  %v230 = vmul.f32 %v50, %v228
  %v231 = vmul.f32 %v51, %v228
  %v232 = vmax.f32 %v230, 0.0
  %v233 = vmax.f32 %v231, 0.0
  %234 = vst [vmem:[#allocation2] sm:$0xff] %v232
  %235 = vst [vmem:[#allocation2 + $0x8] sm:$0xff] %v233
  %s236 = scalar_lea.vmem %s1, 16
  %v237 = vld [vmem:[%s236] sm:$0xff]
  %v238 = vld [vmem:[%s236 + $0x8] sm:$0xff]
  %s239 = scalar_lea.vmem %s0, 8
  %v240 = vld [vmem:[%s239] sm:$0xff]
  %v242 = vsel %vm53, %v240, 0
  %244 = vmatprep.subr.mxu0 0.0
  %245 = vmatpush1.msra.mxu0 0.0
  %246 = vmatprep.subr.mxu0 0.0
  %247 = vmatpush1.msra.mxu0 0.0
  %248 = vmatprep.subr.mxu0 0.0
  %249 = vmatpush1.msra.mxu0 0.0
  %250 = vmatprep.subr.mxu0 0.0
  %251 = vmatpush1.msra.mxu0 0.0
  %252 = vmatprep.subr.mxu0 0.0
  %253 = vmatpush1.msra.mxu0 0.0
  %254 = vmatprep.subr.mxu0 0.0
  %255 = vmatpush1.msra.mxu0 0.0
  %256 = vmatprep.subr.mxu0 0.0
  %257 = vmatpush1.msra.mxu0 0.0
  %258 = vmatprep.subr.mxu0 0.0
  %259 = vmatpush1.msra.mxu0 0.0
  %260 = vmatprep.subr.mxu0 %v48
  %261 = vmatpush1.msra.mxu0 %v47
  %262 = vmatprep.subr.mxu0 %v46
  %263 = vmatpush1.msra.mxu0 %v45
  %264 = vmatprep.subr.mxu0 %v44
  %265 = vmatpush1.msra.mxu0 %v43
  %266 = vmatprep.subr.mxu0 %v42
  %267 = vmatpush1.msra.mxu0 %v41
  %268 = vmatprep.subr.mxu0 %v40
  %269 = vmatpush1.msra.mxu0 %v39
  %270 = vmatprep.subr.mxu0 %v38
  %271 = vmatpush1.msra.mxu0 %v37
  %272 = vmatprep.subr.mxu0 %v36
  %273 = vmatpush1.msra.mxu0 %v35
  %274 = vmatprep.subr.mxu0 %v34
  %275 = vmatpush1.msra.mxu0 %v33
  %276 = vmatprep.subr.mxu0 0.0
  %277 = vmatpush2.msra.mxu0 0.0
  %278 = vmatprep.subr.mxu0 0.0
  %279 = vmatpush2.msra.mxu0 0.0
  %280 = vmatprep.subr.mxu0 0.0
  %281 = vmatpush2.msra.mxu0 0.0
  %282 = vmatprep.subr.mxu0 0.0
  %283 = vmatpush2.msra.mxu0 0.0
  %284 = vmatprep.subr.mxu0 0.0
  %285 = vmatpush2.msra.mxu0 0.0
  %286 = vmatprep.subr.mxu0 0.0
  %287 = vmatpush2.msra.mxu0 0.0
  %288 = vmatprep.subr.mxu0 0.0
  %289 = vmatpush2.msra.mxu0 0.0
  %290 = vmatprep.subr.mxu0 0.0
  %291 = vmatpush2.msra.mxu0 0.0
  %292 = vmatprep.subr.mxu0 0.0
  %293 = vmatpush2.msra.mxu0 0.0
  %294 = vmatprep.subr.mxu0 0.0
  %295 = vmatpush2.msra.mxu0 0.0
  %296 = vmatprep.subr.mxu0 0.0
  %297 = vmatpush2.msra.mxu0 0.0
  %298 = vmatprep.subr.mxu0 0.0
  %299 = vmatpush2.msra.mxu0 0.0
  %300 = vmatprep.subr.mxu0 0.0
  %301 = vmatpush2.msra.mxu0 0.0
  %302 = vmatprep.subr.mxu0 0.0
  %303 = vmatpush2.msra.mxu0 0.0
  %304 = vmatprep.subr.mxu0 0.0
  %305 = vmatpush2.msra.mxu0 0.0
  %306 = vmatprep.subr.mxu0 0.0
  %307 = vmatpush2.msra.mxu0 0.0
  %308 = vmatprep.mubr.f32.mxu0 0.0
  %309 = vmatmul.mubr.f32.gmra.mxu0 %v242
  %v310 = vpop.f32.mrf.mxu0
  %v311 = vadd.f32 0.0, %v310
  %v312 = vpop.f32.mrf.mxu0
  %v313 = vadd.f32 0.0, %v312
  %314 = vdwg.mxu0
  %315 = vst [vmem:[#allocation2 + $0x10] sm:$0xff] %v237
  %316 = vst [vmem:[#allocation2 + $0x18] sm:$0xff] %v238
  %317 = vst [vmem:[#allocation2 + $0x30] sm:$0xff] %v311
  %318 = vst [vmem:[#allocation2 + $0x38] sm:$0xff] %v313
  %v319 = vld [vmem:[#allocation2 + $0x10] sm:$0xff]
  %v320 = vld [vmem:[#allocation2 + $0x18] sm:$0xff]
  %v321 = vld [vmem:[#allocation2 + $0x30] sm:$0xff]
  %v322 = vld [vmem:[#allocation2 + $0x38] sm:$0xff]
  %v323 = vadd.f32 %v319, %v320
  %324 = vadd.xlane.f32.xlu0 %v323
  %v325 = vpop.xlane.xlu0 %324
  %v326 = vadd.f32 %v321, %v322
  %327 = vadd.xlane.f32.xlu0 %v326
  %v328 = vpop.xlane.xlu0 %327
  %v329 = vmul.f32 %v325, %v142
  %v330 = vmul.f32 %v328, %v142
  %331 = vmatprep.subr.mxu0 0.0
  %332 = vmatpush1.msra.mxu0 0.0
  %333 = vmatprep.subr.mxu0 0.0
  %334 = vmatpush1.msra.mxu0 0.0
  %335 = vmatprep.subr.mxu0 0.0
  %336 = vmatpush1.msra.mxu0 0.0
  %337 = vmatprep.subr.mxu0 0.0
  %338 = vmatpush1.msra.mxu0 0.0
  %339 = vmatprep.subr.mxu0 0.0
  %340 = vmatpush1.msra.mxu0 0.0
  %341 = vmatprep.subr.mxu0 0.0
  %342 = vmatpush1.msra.mxu0 0.0
  %343 = vmatprep.subr.mxu0 0.0
  %344 = vmatpush1.msra.mxu0 0.0
  %345 = vmatprep.subr.mxu0 0.0
  %346 = vmatpush1.msra.mxu0 0.0
  %347 = vmatprep.subr.mxu0 0.0
  %348 = vmatpush1.msra.mxu0 0.0
  %349 = vmatprep.subr.mxu0 0.0
  %350 = vmatpush1.msra.mxu0 0.0
  %351 = vmatprep.subr.mxu0 0.0
  %352 = vmatpush1.msra.mxu0 0.0
  %353 = vmatprep.subr.mxu0 0.0
  %354 = vmatpush1.msra.mxu0 0.0
  %355 = vmatprep.subr.mxu0 0.0
  %356 = vmatpush1.msra.mxu0 0.0
  %357 = vmatprep.subr.mxu0 0.0
  %358 = vmatpush1.msra.mxu0 0.0
  %359 = vmatprep.subr.mxu0 0.0
  %360 = vmatpush1.msra.mxu0 %v330
  %361 = vmatprep.subr.mxu0 0.0
  %362 = vmatpush1.msra.mxu0 %v329
  %363 = vmatprep.subr.mxu0 0.0
  %364 = vmatpush2.msra.mxu0 0.0
  %365 = vmatprep.subr.mxu0 0.0
  %366 = vmatpush2.msra.mxu0 0.0
  %367 = vmatprep.subr.mxu0 0.0
  %368 = vmatpush2.msra.mxu0 0.0
  %369 = vmatprep.subr.mxu0 0.0
  %370 = vmatpush2.msra.mxu0 0.0
  %371 = vmatprep.subr.mxu0 0.0
  %372 = vmatpush2.msra.mxu0 0.0
  %373 = vmatprep.subr.mxu0 0.0
  %374 = vmatpush2.msra.mxu0 0.0
  %375 = vmatprep.subr.mxu0 0.0
  %376 = vmatpush2.msra.mxu0 0.0
  %377 = vmatprep.subr.mxu0 0.0
  %378 = vmatpush2.msra.mxu0 0.0
  %379 = vmatprep.subr.mxu0 0.0
  %380 = vmatpush2.msra.mxu0 0.0
  %381 = vmatprep.subr.mxu0 0.0
  %382 = vmatpush2.msra.mxu0 0.0
  %383 = vmatprep.subr.mxu0 0.0
  %384 = vmatpush2.msra.mxu0 0.0
  %385 = vmatprep.subr.mxu0 0.0
  %386 = vmatpush2.msra.mxu0 0.0
  %387 = vmatprep.subr.mxu0 0.0
  %388 = vmatpush2.msra.mxu0 0.0
  %389 = vmatprep.subr.mxu0 0.0
  %390 = vmatpush2.msra.mxu0 0.0
  %391 = vmatprep.subr.mxu0 0.0
  %392 = vmatpush2.msra.mxu0 0.0
  %393 = vmatprep.subr.mxu0 0.0
  %394 = vmatpush2.msra.mxu0 0.0
  %395 = vmatprep.mubr.f32.mxu0 0.0
  %396 = vmatmul.mubr.f32.gmra.mxu0 %v147
  %v397 = vpop.f32.mrf.mxu0
  %v398 = vadd.f32 0.0, %v397
  %v399 = vpop.f32.mrf.mxu0
  %400 = vdwg.mxu0
  %v401 = vxor.u32 %v398, 2147483648
  %v402 = vmul.f32 %v401, 1.442695
  %v403 = vpow.pop %v402
  %v404 = vadd.f32 %v403, 1.0
  %v405 = vrcp.pop %v404
  %v406 = vmul.f32 1.0, %v405
  %408 = vset.pattern.permute.xlu0 0
  %409 = vperm.xlu0 %408, %v406
  %v410 = vpop.permute.xlu0 %409
  %v412 = vmul.f32 %v237, %v410
  %v413 = vmul.f32 %v238, %v410
  %v414 = vmax.f32 %v412, 0.0
  %v415 = vmax.f32 %v413, 0.0
  %416 = vst [vmem:[#allocation2 + $0x10] sm:$0xff] %v414
  %417 = vst [vmem:[#allocation2 + $0x18] sm:$0xff] %v415
  %v418 = vld [vmem:[#allocation2] sm:$0xff]
  %v419 = vld [vmem:[#allocation2 + $0x8] sm:$0xff]
  %v420 = vld [vmem:[#allocation2 + $0x10] sm:$0xff]
  %v421 = vld [vmem:[#allocation2 + $0x18] sm:$0xff]
  %v422 = vld [vmem:[#allocation2 + $0x20] sm:$0xff]
  %v423 = vld [vmem:[#allocation2 + $0x28] sm:$0xff]
  %v424 = vld [vmem:[#allocation2 + $0x30] sm:$0xff]
  %v425 = vld [vmem:[#allocation2 + $0x38] sm:$0xff]
  %426 = vrot.lane.b32.xlu0 %v418, 17
  %v427 = vpop.permute.xlu0 %426
  %428 = vrot.lane.b32.xlu0 %v422, 17
  %v429 = vpop.permute.xlu0 %428
  %430 = vrot.lane.b32.xlu0 %v419, 17
  %v431 = vpop.permute.xlu0 %430
  %432 = vrot.lane.b32.xlu0 %v423, 17
  %v433 = vpop.permute.xlu0 %432
  %434 = vrot.lane.b32.xlu0 %v420, 17
  %v435 = vpop.permute.xlu0 %434
  %436 = vrot.lane.b32.xlu0 %v424, 17
  %v437 = vpop.permute.xlu0 %436
  %438 = vrot.lane.b32.xlu0 %v421, 17
  %v439 = vpop.permute.xlu0 %438
  %440 = vrot.lane.b32.xlu0 %v425, 17
  %v441 = vpop.permute.xlu0 %440
  %v442 = vlaneseq
  %v443 = vand.u32 %v442, 127
  %vm444 = vcmp.lt.s32.totalorder %v443, 17
  %v445 = vsel %vm444, %v435, %v439
  %v446 = vsel %vm444, %v437, %v441
  %v447 = vsel %vm444, %v431, %v435
  %v448 = vsel %vm444, %v433, %v437
  %v449 = vsel %vm444, %v427, %v431
  %v450 = vsel %vm444, %v429, %v433
  %v451 = vsel %vm444, %v439, %v427
  %v452 = vsel %vm444, %v441, %v429
  %v453 = vld [vmem:[%s4] ss:$8 sm:$0xf]
  %v455 = vlaneseq
  %v456 = vshrl.u32 %v455, 7
  %v457 = vsub.s32 0, %v456
  %v458 = vrot.slane %v453, %v457
  %v459 = vlaneseq
  %v460 = vshrl.u32 %v459, 7
  %v461 = vsub.s32 1, %v460
  %v462 = vrot.slane %v453, %v461
  %v463 = vlaneseq
  %v464 = vshrl.u32 %v463, 7
  %v465 = vsub.s32 2, %v464
  %v466 = vrot.slane %v453, %v465
  %v467 = vlaneseq
  %v468 = vshrl.u32 %v467, 7
  %v469 = vsub.s32 3, %v468
  %v470 = vrot.slane %v453, %v469
  %v475 = vmul.f32 %v451, %v458
  %v476 = vmul.f32 %v449, %v462
  %v477 = vmul.f32 %v447, %v466
  %v478 = vmul.f32 %v445, %v470
  %v479 = vmul.f32 %v452, %v458
  %v480 = vmul.f32 %v450, %v462
  %v481 = vmul.f32 %v448, %v466
  %v482 = vmul.f32 %v446, %v470
  %v483 = vpack.c.bf16 %v479, %v475
  %v484 = vpack.c.bf16 %v480, %v476
  %v485 = vpack.c.bf16 %v481, %v477
  %v486 = vpack.c.bf16 %v482, %v478
  %v491 = vunpack.c.l.b16 %v483
  %v492 = vunpack.c.l.b16 %v484
  %v493 = vunpack.c.l.b16 %v485
  %v494 = vunpack.c.l.b16 %v486
  %v495 = vunpack.c.h.b16 %v483
  %v496 = vunpack.c.h.b16 %v484
  %v497 = vunpack.c.h.b16 %v485
  %v498 = vunpack.c.h.b16 %v486
  %v499 = vpack.c.b16 %v492, %v491
  %v500 = vpack.c.b16 %v494, %v493
  %v501 = vpack.c.b16 %v496, %v495
  %v502 = vpack.c.b16 %v498, %v497
  %507 = vst [vmem:[#allocation3] sm:$0xff] %v499
  %508 = vst [vmem:[#allocation3 + $0x8] sm:$0xff] %v500
  %509 = vst [vmem:[#allocation3 + $0x10] sm:$0xff] %v501
  %510 = vst [vmem:[#allocation3 + $0x18] sm:$0xff] %v502
  %511 = vrot.lane.b32.xlu0 %v418, 16
  %v512 = vpop.permute.xlu0 %511
  %513 = vrot.lane.b32.xlu0 %v422, 16
  %v514 = vpop.permute.xlu0 %513
  %515 = vrot.lane.b32.xlu0 %v419, 16
  %v516 = vpop.permute.xlu0 %515
  %517 = vrot.lane.b32.xlu0 %v423, 16
  %v518 = vpop.permute.xlu0 %517
  %519 = vrot.lane.b32.xlu0 %v420, 16
  %v520 = vpop.permute.xlu0 %519
  %521 = vrot.lane.b32.xlu0 %v424, 16
  %v522 = vpop.permute.xlu0 %521
  %523 = vrot.lane.b32.xlu0 %v421, 16
  %v524 = vpop.permute.xlu0 %523
  %525 = vrot.lane.b32.xlu0 %v425, 16
  %v526 = vpop.permute.xlu0 %525
  %vm527 = vcmp.lt.s32.totalorder %v443, 16
  %v528 = vsel %vm527, %v520, %v524
  %v529 = vsel %vm527, %v522, %v526
  %v530 = vsel %vm527, %v516, %v520
  %v531 = vsel %vm527, %v518, %v522
  %v532 = vsel %vm527, %v512, %v516
  %v533 = vsel %vm527, %v514, %v518
  %v534 = vsel %vm527, %v524, %v512
  %v535 = vsel %vm527, %v526, %v514
  %s536 = scalar_lea.vmem %s4, 1
  %v537 = vld [vmem:[%s536] ss:$8 sm:$0xf]
  %v539 = vlaneseq
  %v540 = vshrl.u32 %v539, 7
  %v541 = vsub.s32 0, %v540
  %v542 = vrot.slane %v537, %v541
  %v543 = vlaneseq
  %v544 = vshrl.u32 %v543, 7
  %v545 = vsub.s32 1, %v544
  %v546 = vrot.slane %v537, %v545
  %v547 = vlaneseq
  %v548 = vshrl.u32 %v547, 7
  %v549 = vsub.s32 2, %v548
  %v550 = vrot.slane %v537, %v549
  %v551 = vlaneseq
  %v552 = vshrl.u32 %v551, 7
  %v553 = vsub.s32 3, %v552
  %v554 = vrot.slane %v537, %v553
  %v559 = vmul.f32 %v534, %v542
  %v560 = vmul.f32 %v532, %v546
  %v561 = vmul.f32 %v530, %v550
  %v562 = vmul.f32 %v528, %v554
  %v563 = vmul.f32 %v535, %v542
  %v564 = vmul.f32 %v533, %v546
  %v565 = vmul.f32 %v531, %v550
  %v566 = vmul.f32 %v529, %v554
  %v567 = vpack.c.bf16 %v563, %v559
  %v568 = vpack.c.bf16 %v564, %v560
  %v569 = vpack.c.bf16 %v565, %v561
  %v570 = vpack.c.bf16 %v566, %v562
  %v575 = vunpack.c.l.b16 %v567
  %v576 = vunpack.c.l.b16 %v568
  %v577 = vunpack.c.l.b16 %v569
  %v578 = vunpack.c.l.b16 %v570
  %v579 = vunpack.c.h.b16 %v567
  %v580 = vunpack.c.h.b16 %v568
  %v581 = vunpack.c.h.b16 %v569
  %v582 = vunpack.c.h.b16 %v570
  %v583 = vpack.c.b16 %v576, %v575
  %v584 = vpack.c.b16 %v578, %v577
  %v585 = vpack.c.b16 %v580, %v579
  %v586 = vpack.c.b16 %v582, %v581
  %591 = vst [vmem:[#allocation3 + $0x20] sm:$0xff] %v583
  %592 = vst [vmem:[#allocation3 + $0x28] sm:$0xff] %v584
  %593 = vst [vmem:[#allocation3 + $0x30] sm:$0xff] %v585
  %594 = vst [vmem:[#allocation3 + $0x38] sm:$0xff] %v586
  %595 = vrot.lane.b32.xlu0 %v418, 15
  %v596 = vpop.permute.xlu0 %595
  %597 = vrot.lane.b32.xlu0 %v422, 15
  %v598 = vpop.permute.xlu0 %597
  %599 = vrot.lane.b32.xlu0 %v419, 15
  %v600 = vpop.permute.xlu0 %599
  %601 = vrot.lane.b32.xlu0 %v423, 15
  %v602 = vpop.permute.xlu0 %601
  %603 = vrot.lane.b32.xlu0 %v420, 15
  %v604 = vpop.permute.xlu0 %603
  %605 = vrot.lane.b32.xlu0 %v424, 15
  %v606 = vpop.permute.xlu0 %605
  %607 = vrot.lane.b32.xlu0 %v421, 15
  %v608 = vpop.permute.xlu0 %607
  %609 = vrot.lane.b32.xlu0 %v425, 15
  %v610 = vpop.permute.xlu0 %609
  %vm611 = vcmp.lt.s32.totalorder %v443, 15
  %v612 = vsel %vm611, %v604, %v608
  %v613 = vsel %vm611, %v606, %v610
  %v614 = vsel %vm611, %v600, %v604
  %v615 = vsel %vm611, %v602, %v606
  %v616 = vsel %vm611, %v596, %v600
  %v617 = vsel %vm611, %v598, %v602
  %v618 = vsel %vm611, %v608, %v596
  %v619 = vsel %vm611, %v610, %v598
  %s620 = scalar_lea.vmem %s4, 2
  %v621 = vld [vmem:[%s620] ss:$8 sm:$0xf]
  %v623 = vlaneseq
  %v624 = vshrl.u32 %v623, 7
  %v625 = vsub.s32 0, %v624
  %v626 = vrot.slane %v621, %v625
  %v627 = vlaneseq
  %v628 = vshrl.u32 %v627, 7
  %v629 = vsub.s32 1, %v628
  %v630 = vrot.slane %v621, %v629
  %v631 = vlaneseq
  %v632 = vshrl.u32 %v631, 7
  %v633 = vsub.s32 2, %v632
  %v634 = vrot.slane %v621, %v633
  %v635 = vlaneseq
  %v636 = vshrl.u32 %v635, 7
  %v637 = vsub.s32 3, %v636
  %v638 = vrot.slane %v621, %v637
  %v643 = vmul.f32 %v618, %v626
  %v644 = vmul.f32 %v616, %v630
  %v645 = vmul.f32 %v614, %v634
  %v646 = vmul.f32 %v612, %v638
  %v647 = vmul.f32 %v619, %v626
  %v648 = vmul.f32 %v617, %v630
  %v649 = vmul.f32 %v615, %v634
  %v650 = vmul.f32 %v613, %v638
  %v651 = vpack.c.bf16 %v647, %v643
  %v652 = vpack.c.bf16 %v648, %v644
  %v653 = vpack.c.bf16 %v649, %v645
  %v654 = vpack.c.bf16 %v650, %v646
  %v659 = vunpack.c.l.b16 %v651
  %v660 = vunpack.c.l.b16 %v652
  %v661 = vunpack.c.l.b16 %v653
  %v662 = vunpack.c.l.b16 %v654
  %v663 = vunpack.c.h.b16 %v651
  %v664 = vunpack.c.h.b16 %v652
  %v665 = vunpack.c.h.b16 %v653
  %v666 = vunpack.c.h.b16 %v654
  %v667 = vpack.c.b16 %v660, %v659
  %v668 = vpack.c.b16 %v662, %v661
  %v669 = vpack.c.b16 %v664, %v663
  %v670 = vpack.c.b16 %v666, %v665
  %675 = vst [vmem:[#allocation3 + $0x40] sm:$0xff] %v667
  %676 = vst [vmem:[#allocation3 + $0x48] sm:$0xff] %v668
  %677 = vst [vmem:[#allocation3 + $0x50] sm:$0xff] %v669
  %678 = vst [vmem:[#allocation3 + $0x58] sm:$0xff] %v670
  %679 = vrot.lane.b32.xlu0 %v418, 1
  %v680 = vpop.permute.xlu0 %679
  %681 = vrot.lane.b32.xlu0 %v422, 1
  %v682 = vpop.permute.xlu0 %681
  %683 = vrot.lane.b32.xlu0 %v419, 1
  %v684 = vpop.permute.xlu0 %683
  %685 = vrot.lane.b32.xlu0 %v423, 1
  %v686 = vpop.permute.xlu0 %685
  %687 = vrot.lane.b32.xlu0 %v420, 1
  %v688 = vpop.permute.xlu0 %687
  %689 = vrot.lane.b32.xlu0 %v424, 1
  %v690 = vpop.permute.xlu0 %689
  %691 = vrot.lane.b32.xlu0 %v421, 1
  %v692 = vpop.permute.xlu0 %691
  %693 = vrot.lane.b32.xlu0 %v425, 1
  %v694 = vpop.permute.xlu0 %693
  %vm695 = vcmp.lt.s32.totalorder %v443, 1
  %v696 = vsel %vm695, %v688, %v692
  %v697 = vsel %vm695, %v690, %v694
  %v698 = vsel %vm695, %v684, %v688
  %v699 = vsel %vm695, %v686, %v690
  %v700 = vsel %vm695, %v680, %v684
  %v701 = vsel %vm695, %v682, %v686
  %v702 = vsel %vm695, %v692, %v680
  %v703 = vsel %vm695, %v694, %v682
  %s704 = scalar_lea.vmem %s4, 3
  %v705 = vld [vmem:[%s704] ss:$8 sm:$0xf]
  %v707 = vlaneseq
  %v708 = vshrl.u32 %v707, 7
  %v709 = vsub.s32 0, %v708
  %v710 = vrot.slane %v705, %v709
  %v711 = vlaneseq
  %v712 = vshrl.u32 %v711, 7
  %v713 = vsub.s32 1, %v712
  %v714 = vrot.slane %v705, %v713
  %v715 = vlaneseq
  %v716 = vshrl.u32 %v715, 7
  %v717 = vsub.s32 2, %v716
  %v718 = vrot.slane %v705, %v717
  %v719 = vlaneseq
  %v720 = vshrl.u32 %v719, 7
  %v721 = vsub.s32 3, %v720
  %v722 = vrot.slane %v705, %v721
  %v727 = vmul.f32 %v702, %v710
  %v728 = vmul.f32 %v700, %v714
  %v729 = vmul.f32 %v698, %v718
  %v730 = vmul.f32 %v696, %v722
  %v731 = vmul.f32 %v703, %v710
  %v732 = vmul.f32 %v701, %v714
  %v733 = vmul.f32 %v699, %v718
  %v734 = vmul.f32 %v697, %v722
  %v735 = vpack.c.bf16 %v731, %v727
  %v736 = vpack.c.bf16 %v732, %v728
  %v737 = vpack.c.bf16 %v733, %v729
  %v738 = vpack.c.bf16 %v734, %v730
  %v743 = vunpack.c.l.b16 %v735
  %v744 = vunpack.c.l.b16 %v736
  %v745 = vunpack.c.l.b16 %v737
  %v746 = vunpack.c.l.b16 %v738
  %v747 = vunpack.c.h.b16 %v735
  %v748 = vunpack.c.h.b16 %v736
  %v749 = vunpack.c.h.b16 %v737
  %v750 = vunpack.c.h.b16 %v738
  %v751 = vpack.c.b16 %v744, %v743
  %v752 = vpack.c.b16 %v746, %v745
  %v753 = vpack.c.b16 %v748, %v747
  %v754 = vpack.c.b16 %v750, %v749
  %759 = vst [vmem:[#allocation3 + $0x60] sm:$0xff] %v751
  %760 = vst [vmem:[#allocation3 + $0x68] sm:$0xff] %v752
  %761 = vst [vmem:[#allocation3 + $0x70] sm:$0xff] %v753
  %762 = vst [vmem:[#allocation3 + $0x78] sm:$0xff] %v754
  %v763 = vpack.c.bf16 %v422, %v418
  %v764 = vpack.c.bf16 %v423, %v419
  %v765 = vpack.c.bf16 %v424, %v420
  %v766 = vpack.c.bf16 %v425, %v421
  %v771 = vunpack.c.l.b16 %v763
  %v772 = vunpack.c.l.b16 %v764
  %v773 = vunpack.c.l.b16 %v765
  %v774 = vunpack.c.l.b16 %v766
  %v775 = vunpack.c.h.b16 %v763
  %v776 = vunpack.c.h.b16 %v764
  %v777 = vunpack.c.h.b16 %v765
  %v778 = vunpack.c.h.b16 %v766
  %v779 = vpack.c.b16 %v772, %v771
  %v780 = vpack.c.b16 %v774, %v773
  %v781 = vpack.c.b16 %v776, %v775
  %v782 = vpack.c.b16 %v778, %v777
  %787 = vst [vmem:[#allocation3 + $0x80] sm:$0xff] %v779
  %788 = vst [vmem:[#allocation3 + $0x88] sm:$0xff] %v780
  %789 = vst [vmem:[#allocation3 + $0x90] sm:$0xff] %v781
  %790 = vst [vmem:[#allocation3 + $0x98] sm:$0xff] %v782
  %791 = vrot.lane.b32.xlu0 %v418, 127
  %v792 = vpop.permute.xlu0 %791
  %793 = vrot.lane.b32.xlu0 %v422, 127
  %v794 = vpop.permute.xlu0 %793
  %795 = vrot.lane.b32.xlu0 %v419, 127
  %v796 = vpop.permute.xlu0 %795
  %797 = vrot.lane.b32.xlu0 %v423, 127
  %v798 = vpop.permute.xlu0 %797
  %799 = vrot.lane.b32.xlu0 %v420, 127
  %v800 = vpop.permute.xlu0 %799
  %801 = vrot.lane.b32.xlu0 %v424, 127
  %v802 = vpop.permute.xlu0 %801
  %803 = vrot.lane.b32.xlu0 %v421, 127
  %v804 = vpop.permute.xlu0 %803
  %805 = vrot.lane.b32.xlu0 %v425, 127
  %v806 = vpop.permute.xlu0 %805
  %vm807 = vcmp.lt.s32.totalorder %v443, 127
  %v808 = vsel %vm807, %v800, %v804
  %v809 = vsel %vm807, %v802, %v806
  %v810 = vsel %vm807, %v796, %v800
  %v811 = vsel %vm807, %v798, %v802
  %v812 = vsel %vm807, %v792, %v796
  %v813 = vsel %vm807, %v794, %v798
  %v814 = vsel %vm807, %v804, %v792
  %v815 = vsel %vm807, %v806, %v794
  %s816 = scalar_lea.vmem %s4, 5
  %v817 = vld [vmem:[%s816] ss:$8 sm:$0xf]
  %v819 = vlaneseq
  %v820 = vshrl.u32 %v819, 7
  %v821 = vsub.s32 0, %v820
  %v822 = vrot.slane %v817, %v821
  %v823 = vlaneseq
  %v824 = vshrl.u32 %v823, 7
  %v825 = vsub.s32 1, %v824
  %v826 = vrot.slane %v817, %v825
  %v827 = vlaneseq
  %v828 = vshrl.u32 %v827, 7
  %v829 = vsub.s32 2, %v828
  %v830 = vrot.slane %v817, %v829
  %v831 = vlaneseq
  %v832 = vshrl.u32 %v831, 7
  %v833 = vsub.s32 3, %v832
  %v834 = vrot.slane %v817, %v833
  %v839 = vmul.f32 %v812, %v822
  %v840 = vmul.f32 %v810, %v826
  %v841 = vmul.f32 %v808, %v830
  %v842 = vmul.f32 %v814, %v834
  %v843 = vmul.f32 %v813, %v822
  %v844 = vmul.f32 %v811, %v826
  %v845 = vmul.f32 %v809, %v830
  %v846 = vmul.f32 %v815, %v834
  %v847 = vpack.c.bf16 %v843, %v839
  %v848 = vpack.c.bf16 %v844, %v840
  %v849 = vpack.c.bf16 %v845, %v841
  %v850 = vpack.c.bf16 %v846, %v842
  %v855 = vunpack.c.l.b16 %v847
  %v856 = vunpack.c.l.b16 %v848
  %v857 = vunpack.c.l.b16 %v849
  %v858 = vunpack.c.l.b16 %v850
  %v859 = vunpack.c.h.b16 %v847
  %v860 = vunpack.c.h.b16 %v848
  %v861 = vunpack.c.h.b16 %v849
  %v862 = vunpack.c.h.b16 %v850
  %v863 = vpack.c.b16 %v856, %v855
  %v864 = vpack.c.b16 %v858, %v857
  %v865 = vpack.c.b16 %v860, %v859
  %v866 = vpack.c.b16 %v862, %v861
  %871 = vst [vmem:[#allocation3 + $0xa0] sm:$0xff] %v863
  %872 = vst [vmem:[#allocation3 + $0xa8] sm:$0xff] %v864
  %873 = vst [vmem:[#allocation3 + $0xb0] sm:$0xff] %v865
  %874 = vst [vmem:[#allocation3 + $0xb8] sm:$0xff] %v866
  %875 = vrot.lane.b32.xlu0 %v418, 113
  %v876 = vpop.permute.xlu0 %875
  %877 = vrot.lane.b32.xlu0 %v422, 113
  %v878 = vpop.permute.xlu0 %877
  %879 = vrot.lane.b32.xlu0 %v419, 113
  %v880 = vpop.permute.xlu0 %879
  %881 = vrot.lane.b32.xlu0 %v423, 113
  %v882 = vpop.permute.xlu0 %881
  %883 = vrot.lane.b32.xlu0 %v420, 113
  %v884 = vpop.permute.xlu0 %883
  %885 = vrot.lane.b32.xlu0 %v424, 113
  %v886 = vpop.permute.xlu0 %885
  %887 = vrot.lane.b32.xlu0 %v421, 113
  %v888 = vpop.permute.xlu0 %887
  %889 = vrot.lane.b32.xlu0 %v425, 113
  %v890 = vpop.permute.xlu0 %889
  %vm891 = vcmp.lt.s32.totalorder %v443, 113
  %v892 = vsel %vm891, %v884, %v888
  %v893 = vsel %vm891, %v886, %v890
  %v894 = vsel %vm891, %v880, %v884
  %v895 = vsel %vm891, %v882, %v886
  %v896 = vsel %vm891, %v876, %v880
  %v897 = vsel %vm891, %v878, %v882
  %v898 = vsel %vm891, %v888, %v876
  %v899 = vsel %vm891, %v890, %v878
  %s900 = scalar_lea.vmem %s4, 6
  %v901 = vld [vmem:[%s900] ss:$8 sm:$0xf]
  %v903 = vlaneseq
  %v904 = vshrl.u32 %v903, 7
  %v905 = vsub.s32 0, %v904
  %v906 = vrot.slane %v901, %v905
  %v907 = vlaneseq
  %v908 = vshrl.u32 %v907, 7
  %v909 = vsub.s32 1, %v908
  %v910 = vrot.slane %v901, %v909
  %v911 = vlaneseq
  %v912 = vshrl.u32 %v911, 7
  %v913 = vsub.s32 2, %v912
  %v914 = vrot.slane %v901, %v913
  %v915 = vlaneseq
  %v916 = vshrl.u32 %v915, 7
  %v917 = vsub.s32 3, %v916
  %v918 = vrot.slane %v901, %v917
  %v923 = vmul.f32 %v896, %v906
  %v924 = vmul.f32 %v894, %v910
  %v925 = vmul.f32 %v892, %v914
  %v926 = vmul.f32 %v898, %v918
  %v927 = vmul.f32 %v897, %v906
  %v928 = vmul.f32 %v895, %v910
  %v929 = vmul.f32 %v893, %v914
  %v930 = vmul.f32 %v899, %v918
  %v931 = vpack.c.bf16 %v927, %v923
  %v932 = vpack.c.bf16 %v928, %v924
  %v933 = vpack.c.bf16 %v929, %v925
  %v934 = vpack.c.bf16 %v930, %v926
  %v939 = vunpack.c.l.b16 %v931
  %v940 = vunpack.c.l.b16 %v932
  %v941 = vunpack.c.l.b16 %v933
  %v942 = vunpack.c.l.b16 %v934
  %v943 = vunpack.c.h.b16 %v931
  %v944 = vunpack.c.h.b16 %v932
  %v945 = vunpack.c.h.b16 %v933
  %v946 = vunpack.c.h.b16 %v934
  %v947 = vpack.c.b16 %v940, %v939
  %v948 = vpack.c.b16 %v942, %v941
  %v949 = vpack.c.b16 %v944, %v943
  %v950 = vpack.c.b16 %v946, %v945
  %955 = vst [vmem:[#allocation3 + $0xc0] sm:$0xff] %v947
  %956 = vst [vmem:[#allocation3 + $0xc8] sm:$0xff] %v948
  %957 = vst [vmem:[#allocation3 + $0xd0] sm:$0xff] %v949
  %958 = vst [vmem:[#allocation3 + $0xd8] sm:$0xff] %v950
  %959 = vrot.lane.b32.xlu0 %v418, 112
  %v960 = vpop.permute.xlu0 %959
  %961 = vrot.lane.b32.xlu0 %v422, 112
  %v962 = vpop.permute.xlu0 %961
  %963 = vrot.lane.b32.xlu0 %v419, 112
  %v964 = vpop.permute.xlu0 %963
  %965 = vrot.lane.b32.xlu0 %v423, 112
  %v966 = vpop.permute.xlu0 %965
  %967 = vrot.lane.b32.xlu0 %v420, 112
  %v968 = vpop.permute.xlu0 %967
  %969 = vrot.lane.b32.xlu0 %v424, 112
  %v970 = vpop.permute.xlu0 %969
  %971 = vrot.lane.b32.xlu0 %v421, 112
  %v972 = vpop.permute.xlu0 %971
  %973 = vrot.lane.b32.xlu0 %v425, 112
  %v974 = vpop.permute.xlu0 %973
  %vm975 = vcmp.lt.s32.totalorder %v443, 112
  %v976 = vsel %vm975, %v968, %v972
  %v977 = vsel %vm975, %v970, %v974
  %v978 = vsel %vm975, %v964, %v968
  %v979 = vsel %vm975, %v966, %v970
  %v980 = vsel %vm975, %v960, %v964
  %v981 = vsel %vm975, %v962, %v966
  %v982 = vsel %vm975, %v972, %v960
  %v983 = vsel %vm975, %v974, %v962
  %s984 = scalar_lea.vmem %s4, 7
  %v985 = vld [vmem:[%s984] ss:$8 sm:$0xf]
  %v987 = vlaneseq
  %v988 = vshrl.u32 %v987, 7
  %v989 = vsub.s32 0, %v988
  %v990 = vrot.slane %v985, %v989
  %v991 = vlaneseq
  %v992 = vshrl.u32 %v991, 7
  %v993 = vsub.s32 1, %v992
  %v994 = vrot.slane %v985, %v993
  %v995 = vlaneseq
  %v996 = vshrl.u32 %v995, 7
  %v997 = vsub.s32 2, %v996
  %v998 = vrot.slane %v985, %v997
  %v999 = vlaneseq
  %v1000 = vshrl.u32 %v999, 7
  %v1001 = vsub.s32 3, %v1000
  %v1002 = vrot.slane %v985, %v1001
  %v1007 = vmul.f32 %v980, %v990
  %v1008 = vmul.f32 %v978, %v994
  %v1009 = vmul.f32 %v976, %v998
  %v1010 = vmul.f32 %v982, %v1002
  %v1011 = vmul.f32 %v981, %v990
  %v1012 = vmul.f32 %v979, %v994
  %v1013 = vmul.f32 %v977, %v998
  %v1014 = vmul.f32 %v983, %v1002
  %v1015 = vpack.c.bf16 %v1011, %v1007
  %v1016 = vpack.c.bf16 %v1012, %v1008
  %v1017 = vpack.c.bf16 %v1013, %v1009
  %v1018 = vpack.c.bf16 %v1014, %v1010
  %v1023 = vunpack.c.l.b16 %v1015
  %v1024 = vunpack.c.l.b16 %v1016
  %v1025 = vunpack.c.l.b16 %v1017
  %v1026 = vunpack.c.l.b16 %v1018
  %v1027 = vunpack.c.h.b16 %v1015
  %v1028 = vunpack.c.h.b16 %v1016
  %v1029 = vunpack.c.h.b16 %v1017
  %v1030 = vunpack.c.h.b16 %v1018
  %v1031 = vpack.c.b16 %v1024, %v1023
  %v1032 = vpack.c.b16 %v1026, %v1025
  %v1033 = vpack.c.b16 %v1028, %v1027
  %v1034 = vpack.c.b16 %v1030, %v1029
  %1039 = vst [vmem:[#allocation3 + $0xe0] sm:$0xff] %v1031
  %1040 = vst [vmem:[#allocation3 + $0xe8] sm:$0xff] %v1032
  %1041 = vst [vmem:[#allocation3 + $0xf0] sm:$0xff] %v1033
  %1042 = vst [vmem:[#allocation3 + $0xf8] sm:$0xff] %v1034
  %1043 = vrot.lane.b32.xlu0 %v418, 111
  %v1044 = vpop.permute.xlu0 %1043
  %1045 = vrot.lane.b32.xlu0 %v422, 111
  %v1046 = vpop.permute.xlu0 %1045
  %1047 = vrot.lane.b32.xlu0 %v419, 111
  %v1048 = vpop.permute.xlu0 %1047
  %1049 = vrot.lane.b32.xlu0 %v423, 111
  %v1050 = vpop.permute.xlu0 %1049
  %1051 = vrot.lane.b32.xlu0 %v420, 111
  %v1052 = vpop.permute.xlu0 %1051
  %1053 = vrot.lane.b32.xlu0 %v424, 111
  %v1054 = vpop.permute.xlu0 %1053
  %1055 = vrot.lane.b32.xlu0 %v421, 111
  %v1056 = vpop.permute.xlu0 %1055
  %1057 = vrot.lane.b32.xlu0 %v425, 111
  %v1058 = vpop.permute.xlu0 %1057
  %vm1059 = vcmp.lt.s32.totalorder %v443, 111
  %v1060 = vsel %vm1059, %v1052, %v1056
  %v1061 = vsel %vm1059, %v1054, %v1058
  %v1062 = vsel %vm1059, %v1048, %v1052
  %v1063 = vsel %vm1059, %v1050, %v1054
  %v1064 = vsel %vm1059, %v1044, %v1048
  %v1065 = vsel %vm1059, %v1046, %v1050
  %v1066 = vsel %vm1059, %v1056, %v1044
  %v1067 = vsel %vm1059, %v1058, %v1046
  %s1068 = scalar_lea.vmem %s4, 32
  %v1069 = vld [vmem:[%s1068] ss:$8 sm:$0xf]
  %v1071 = vlaneseq
  %v1072 = vshrl.u32 %v1071, 7
  %v1073 = vsub.s32 0, %v1072
  %v1074 = vrot.slane %v1069, %v1073
  %v1075 = vlaneseq
  %v1076 = vshrl.u32 %v1075, 7
  %v1077 = vsub.s32 1, %v1076
  %v1078 = vrot.slane %v1069, %v1077
  %v1079 = vlaneseq
  %v1080 = vshrl.u32 %v1079, 7
  %v1081 = vsub.s32 2, %v1080
  %v1082 = vrot.slane %v1069, %v1081
  %v1083 = vlaneseq
  %v1084 = vshrl.u32 %v1083, 7
  %v1085 = vsub.s32 3, %v1084
  %v1086 = vrot.slane %v1069, %v1085
  %v1091 = vmul.f32 %v1064, %v1074
  %v1092 = vmul.f32 %v1062, %v1078
  %v1093 = vmul.f32 %v1060, %v1082
  %v1094 = vmul.f32 %v1066, %v1086
  %v1095 = vmul.f32 %v1065, %v1074
  %v1096 = vmul.f32 %v1063, %v1078
  %v1097 = vmul.f32 %v1061, %v1082
  %v1098 = vmul.f32 %v1067, %v1086
  %v1099 = vpack.c.bf16 %v1095, %v1091
  %v1100 = vpack.c.bf16 %v1096, %v1092
  %v1101 = vpack.c.bf16 %v1097, %v1093
  %v1102 = vpack.c.bf16 %v1098, %v1094
  %v1107 = vunpack.c.l.b16 %v1099
  %v1108 = vunpack.c.l.b16 %v1100
  %v1109 = vunpack.c.l.b16 %v1101
  %v1110 = vunpack.c.l.b16 %v1102
  %v1111 = vunpack.c.h.b16 %v1099
  %v1112 = vunpack.c.h.b16 %v1100
  %v1113 = vunpack.c.h.b16 %v1101
  %v1114 = vunpack.c.h.b16 %v1102
  %v1115 = vpack.c.b16 %v1108, %v1107
  %v1116 = vpack.c.b16 %v1110, %v1109
  %v1117 = vpack.c.b16 %v1112, %v1111
  %v1118 = vpack.c.b16 %v1114, %v1113
  %1123 = vst [vmem:[#allocation3 + $0x100] sm:$0xff] %v1115
  %1124 = vst [vmem:[#allocation3 + $0x108] sm:$0xff] %v1116
  %1125 = vst [vmem:[#allocation3 + $0x110] sm:$0xff] %v1117
  %1126 = vst [vmem:[#allocation3 + $0x118] sm:$0xff] %v1118
  %v1127 = vld [vmem:[%s5] sm:$0xff]
  %v1128 = vld [vmem:[%s5 + $0x8] sm:$0xff]
  %v1129 = vld [vmem:[#allocation3] sm:$0xff]
  %v1130 = vld [vmem:[#allocation3 + $0x8] sm:$0xff]
  %v1131 = vld [vmem:[#allocation3 + $0x10] sm:$0xff]
  %v1132 = vld [vmem:[#allocation3 + $0x18] sm:$0xff]
  %v1133 = vld [vmem:[#allocation3 + $0x20] sm:$0xff]
  %v1134 = vld [vmem:[#allocation3 + $0x28] sm:$0xff]
  %v1135 = vld [vmem:[#allocation3 + $0x30] sm:$0xff]
  %v1136 = vld [vmem:[#allocation3 + $0x38] sm:$0xff]
  %v1137 = vld [vmem:[#allocation3 + $0x40] sm:$0xff]
  %v1138 = vld [vmem:[#allocation3 + $0x48] sm:$0xff]
  %v1139 = vld [vmem:[#allocation3 + $0x50] sm:$0xff]
  %v1140 = vld [vmem:[#allocation3 + $0x58] sm:$0xff]
  %v1141 = vld [vmem:[#allocation3 + $0x60] sm:$0xff]
  %v1142 = vld [vmem:[#allocation3 + $0x68] sm:$0xff]
  %v1143 = vld [vmem:[#allocation3 + $0x70] sm:$0xff]
  %v1144 = vld [vmem:[#allocation3 + $0x78] sm:$0xff]
  %v1145 = vld [vmem:[#allocation3 + $0x80] sm:$0xff]
  %v1146 = vld [vmem:[#allocation3 + $0x88] sm:$0xff]
  %v1147 = vld [vmem:[#allocation3 + $0x90] sm:$0xff]
  %v1148 = vld [vmem:[#allocation3 + $0x98] sm:$0xff]
  %v1149 = vld [vmem:[#allocation3 + $0xa0] sm:$0xff]
  %v1150 = vld [vmem:[#allocation3 + $0xa8] sm:$0xff]
  %v1151 = vld [vmem:[#allocation3 + $0xb0] sm:$0xff]
  %v1152 = vld [vmem:[#allocation3 + $0xb8] sm:$0xff]
  %v1153 = vld [vmem:[#allocation3 + $0xc0] sm:$0xff]
  %v1154 = vld [vmem:[#allocation3 + $0xc8] sm:$0xff]
  %v1155 = vld [vmem:[#allocation3 + $0xd0] sm:$0xff]
  %v1156 = vld [vmem:[#allocation3 + $0xd8] sm:$0xff]
  %v1157 = vld [vmem:[#allocation3 + $0xe0] sm:$0xff]
  %v1158 = vld [vmem:[#allocation3 + $0xe8] sm:$0xff]
  %v1159 = vld [vmem:[#allocation3 + $0xf0] sm:$0xff]
  %v1160 = vld [vmem:[#allocation3 + $0xf8] sm:$0xff]
  %v1161 = vld [vmem:[#allocation3 + $0x100] sm:$0xff]
  %v1162 = vld [vmem:[#allocation3 + $0x108] sm:$0xff]
  %v1163 = vld [vmem:[#allocation3 + $0x110] sm:$0xff]
  %v1164 = vld [vmem:[#allocation3 + $0x118] sm:$0xff]
  %v1165 = vld [vmem:[%s6] sm:$0xff]
  %v1166 = vld [vmem:[%s6 + $0x8] sm:$0xff]
  %1168 = vset.pattern.permute.xlu0 0
  %1169 = vperm.xlu0 %1168, %v1165
  %v1170 = vpop.permute.xlu0 %1169
  %1173 = vset.pattern.permute.xlu0 0
  %1174 = vperm.xlu0 %1173, %v1166
  %v1175 = vpop.permute.xlu0 %1174
  %v1179 = vunpack.c.l.b16 %v1127
  %v1180 = vunpack.c.h.b16 %v1127
  %v1181 = vunpack.c.l.b16 %v1128
  %v1182 = vunpack.c.h.b16 %v1128
  %v1183 = vpack.c.b16 %v1181, %v1179
  %v1184 = vpack.c.b16 %v1182, %v1180
  %v1222 = vunpack.c.l.b16 %v1129
  %v1223 = vunpack.c.h.b16 %v1129
  %v1224 = vunpack.c.l.b16 %v1130
  %v1225 = vunpack.c.h.b16 %v1130
  %v1226 = vunpack.c.l.b16 %v1131
  %v1227 = vunpack.c.h.b16 %v1131
  %v1228 = vunpack.c.l.b16 %v1132
  %v1229 = vunpack.c.h.b16 %v1132
  %v1230 = vunpack.c.l.b16 %v1133
  %v1231 = vunpack.c.h.b16 %v1133
  %v1232 = vunpack.c.l.b16 %v1134
  %v1233 = vunpack.c.h.b16 %v1134
  %v1234 = vunpack.c.l.b16 %v1135
  %v1235 = vunpack.c.h.b16 %v1135
  %v1236 = vunpack.c.l.b16 %v1136
  %v1237 = vunpack.c.h.b16 %v1136
  %v1238 = vunpack.c.l.b16 %v1137
  %v1239 = vunpack.c.h.b16 %v1137
  %v1240 = vunpack.c.l.b16 %v1138
  %v1241 = vunpack.c.h.b16 %v1138
  %v1242 = vunpack.c.l.b16 %v1139
  %v1243 = vunpack.c.h.b16 %v1139
  %v1244 = vunpack.c.l.b16 %v1140
  %v1245 = vunpack.c.h.b16 %v1140
  %v1246 = vunpack.c.l.b16 %v1141
  %v1247 = vunpack.c.h.b16 %v1141
  %v1248 = vunpack.c.l.b16 %v1142
  %v1249 = vunpack.c.h.b16 %v1142
  %v1250 = vunpack.c.l.b16 %v1143
  %v1251 = vunpack.c.h.b16 %v1143
  %v1252 = vunpack.c.l.b16 %v1144
  %v1253 = vunpack.c.h.b16 %v1144
  %v1254 = vunpack.c.l.b16 %v1145
  %v1255 = vunpack.c.h.b16 %v1145
  %v1256 = vunpack.c.l.b16 %v1146
  %v1257 = vunpack.c.h.b16 %v1146
  %v1258 = vunpack.c.l.b16 %v1147
  %v1259 = vunpack.c.h.b16 %v1147
  %v1260 = vunpack.c.l.b16 %v1148
  %v1261 = vunpack.c.h.b16 %v1148
  %v1262 = vunpack.c.l.b16 %v1149
  %v1263 = vunpack.c.h.b16 %v1149
  %v1264 = vunpack.c.l.b16 %v1150
  %v1265 = vunpack.c.h.b16 %v1150
  %v1266 = vunpack.c.l.b16 %v1151
  %v1267 = vunpack.c.h.b16 %v1151
  %v1268 = vunpack.c.l.b16 %v1152
  %v1269 = vunpack.c.h.b16 %v1152
  %v1270 = vunpack.c.l.b16 %v1153
  %v1271 = vunpack.c.h.b16 %v1153
  %v1272 = vunpack.c.l.b16 %v1154
  %v1273 = vunpack.c.h.b16 %v1154
  %v1274 = vunpack.c.l.b16 %v1155
  %v1275 = vunpack.c.h.b16 %v1155
  %v1276 = vunpack.c.l.b16 %v1156
  %v1277 = vunpack.c.h.b16 %v1156
  %v1278 = vunpack.c.l.b16 %v1157
  %v1279 = vunpack.c.h.b16 %v1157
  %v1280 = vunpack.c.l.b16 %v1158
  %v1281 = vunpack.c.h.b16 %v1158
  %v1282 = vunpack.c.l.b16 %v1159
  %v1283 = vunpack.c.h.b16 %v1159
  %v1284 = vunpack.c.l.b16 %v1160
  %v1285 = vunpack.c.h.b16 %v1160
  %v1286 = vunpack.c.l.b16 %v1161
  %v1287 = vunpack.c.h.b16 %v1161
  %v1288 = vunpack.c.l.b16 %v1162
  %v1289 = vunpack.c.h.b16 %v1162
  %v1290 = vunpack.c.l.b16 %v1163
  %v1291 = vunpack.c.h.b16 %v1163
  %v1292 = vunpack.c.l.b16 %v1164
  %v1293 = vunpack.c.h.b16 %v1164
  %v1294 = vpack.c.b16 %v1226, %v1222
  %v1295 = vpack.c.b16 %v1227, %v1223
  %v1296 = vpack.c.b16 %v1228, %v1224
  %v1297 = vpack.c.b16 %v1229, %v1225
  %v1298 = vpack.c.b16 %v1234, %v1230
  %v1299 = vpack.c.b16 %v1235, %v1231
  %v1300 = vpack.c.b16 %v1236, %v1232
  %v1301 = vpack.c.b16 %v1237, %v1233
  %v1302 = vpack.c.b16 %v1242, %v1238
  %v1303 = vpack.c.b16 %v1243, %v1239
  %v1304 = vpack.c.b16 %v1244, %v1240
  %v1305 = vpack.c.b16 %v1245, %v1241
  %v1306 = vpack.c.b16 %v1250, %v1246
  %v1307 = vpack.c.b16 %v1251, %v1247
  %v1308 = vpack.c.b16 %v1252, %v1248
  %v1309 = vpack.c.b16 %v1253, %v1249
  %v1310 = vpack.c.b16 %v1258, %v1254
  %v1311 = vpack.c.b16 %v1259, %v1255
  %v1312 = vpack.c.b16 %v1260, %v1256
  %v1313 = vpack.c.b16 %v1261, %v1257
  %v1314 = vpack.c.b16 %v1266, %v1262
  %v1315 = vpack.c.b16 %v1267, %v1263
  %v1316 = vpack.c.b16 %v1268, %v1264
  %v1317 = vpack.c.b16 %v1269, %v1265
  %v1318 = vpack.c.b16 %v1274, %v1270
  %v1319 = vpack.c.b16 %v1275, %v1271
  %v1320 = vpack.c.b16 %v1276, %v1272
  %v1321 = vpack.c.b16 %v1277, %v1273
  %v1322 = vpack.c.b16 %v1282, %v1278
  %v1323 = vpack.c.b16 %v1283, %v1279
  %v1324 = vpack.c.b16 %v1284, %v1280
  %v1325 = vpack.c.b16 %v1285, %v1281
  %v1326 = vpack.c.b16 %v1290, %v1286
  %v1327 = vpack.c.b16 %v1291, %v1287
  %v1328 = vpack.c.b16 %v1292, %v1288
  %v1329 = vpack.c.b16 %v1293, %v1289
  %v1367 = vsel %vm145, %v1184, 0
  %1369 = vmatprep.subr.bf16.mxu0 %v1323
  %1370 = vmatpush1.bf16.msra.mxu0 %v1322
  %1371 = vmatprep.subr.bf16.mxu0 %v1319
  %1372 = vmatpush1.bf16.msra.mxu0 %v1318
  %1373 = vmatprep.subr.bf16.mxu0 %v1315
  %1374 = vmatpush1.bf16.msra.mxu0 %v1314
  %1375 = vmatprep.subr.bf16.mxu0 %v1311
  %1376 = vmatpush1.bf16.msra.mxu0 %v1310
  %1377 = vmatprep.subr.bf16.mxu0 %v1307
  %1378 = vmatpush1.bf16.msra.mxu0 %v1306
  %1379 = vmatprep.subr.bf16.mxu0 %v1303
  %1380 = vmatpush1.bf16.msra.mxu0 %v1302
  %1381 = vmatprep.subr.bf16.mxu0 %v1299
  %1382 = vmatpush1.bf16.msra.mxu0 %v1298
  %1383 = vmatprep.subr.bf16.mxu0 %v1295
  %1384 = vmatpush1.bf16.msra.mxu0 %v1294
  %1385 = vmatprep.subr.bf16.mxu0 0
  %1386 = vmatpush2.bf16.msra.mxu0 0
  %1387 = vmatprep.subr.bf16.mxu0 0
  %1388 = vmatpush2.bf16.msra.mxu0 0
  %1389 = vmatprep.subr.bf16.mxu0 0
  %1390 = vmatpush2.bf16.msra.mxu0 0
  %1391 = vmatprep.subr.bf16.mxu0 0
  %1392 = vmatpush2.bf16.msra.mxu0 0
  %1393 = vmatprep.subr.bf16.mxu0 0
  %1394 = vmatpush2.bf16.msra.mxu0 0
  %1395 = vmatprep.subr.bf16.mxu0 0
  %1396 = vmatpush2.bf16.msra.mxu0 0
  %1397 = vmatprep.subr.bf16.mxu0 0
  %1398 = vmatpush2.bf16.msra.mxu0 0
  %1399 = vmatprep.subr.bf16.mxu0 %v1327
  %1400 = vmatpush2.bf16.msra.mxu0 %v1326
  %1401 = vmatprep.mubr.bf16.mxu0 %v1367
  %1402 = vmatmul.mubr.bf16.gmra.mxu0 %v1183
  %v1403 = vpop.f32.mrf.mxu0
  %v1404 = vadd.f32 %v1170, %v1403
  %v1405 = vpop.f32.mrf.mxu0
  %v1406 = vadd.f32 %v1170, %v1405
  %v1407 = vpop.f32.mrf.mxu0
  %v1408 = vadd.f32 %v1175, %v1407
  %v1409 = vpop.f32.mrf.mxu0
  %v1410 = vadd.f32 %v1175, %v1409
  %1411 = vdwg.mxu0
  %1412 = vmatprep.subr.bf16.mxu0 %v1325
  %1413 = vmatpush1.bf16.msra.mxu0 %v1324
  %1414 = vmatprep.subr.bf16.mxu0 %v1321
  %1415 = vmatpush1.bf16.msra.mxu0 %v1320
  %1416 = vmatprep.subr.bf16.mxu0 %v1317
  %1417 = vmatpush1.bf16.msra.mxu0 %v1316
  %1418 = vmatprep.subr.bf16.mxu0 %v1313
  %1419 = vmatpush1.bf16.msra.mxu0 %v1312
  %1420 = vmatprep.subr.bf16.mxu0 %v1309
  %1421 = vmatpush1.bf16.msra.mxu0 %v1308
  %1422 = vmatprep.subr.bf16.mxu0 %v1305
  %1423 = vmatpush1.bf16.msra.mxu0 %v1304
  %1424 = vmatprep.subr.bf16.mxu0 %v1301
  %1425 = vmatpush1.bf16.msra.mxu0 %v1300
  %1426 = vmatprep.subr.bf16.mxu0 %v1297
  %1427 = vmatpush1.bf16.msra.mxu0 %v1296
  %1428 = vmatprep.subr.bf16.mxu0 0
  %1429 = vmatpush2.bf16.msra.mxu0 0
  %1430 = vmatprep.subr.bf16.mxu0 0
  %1431 = vmatpush2.bf16.msra.mxu0 0
  %1432 = vmatprep.subr.bf16.mxu0 0
  %1433 = vmatpush2.bf16.msra.mxu0 0
  %1434 = vmatprep.subr.bf16.mxu0 0
  %1435 = vmatpush2.bf16.msra.mxu0 0
  %1436 = vmatprep.subr.bf16.mxu0 0
  %1437 = vmatpush2.bf16.msra.mxu0 0
  %1438 = vmatprep.subr.bf16.mxu0 0
  %1439 = vmatpush2.bf16.msra.mxu0 0
  %1440 = vmatprep.subr.bf16.mxu0 0
  %1441 = vmatpush2.bf16.msra.mxu0 0
  %1442 = vmatprep.subr.bf16.mxu0 %v1329
  %1443 = vmatpush2.bf16.msra.mxu0 %v1328
  %1444 = vmatprep.mubr.bf16.mxu0 %v1367
  %1445 = vmatmul.mubr.bf16.gmra.mxu0 %v1183
  %v1446 = vpop.f32.mrf.mxu0
  %v1447 = vadd.f32 %v1170, %v1446
  %v1448 = vpop.f32.mrf.mxu0
  %v1449 = vadd.f32 %v1170, %v1448
  %v1450 = vpop.f32.mrf.mxu0
  %v1451 = vadd.f32 %v1175, %v1450
  %v1452 = vpop.f32.mrf.mxu0
  %v1453 = vadd.f32 %v1175, %v1452
  %1454 = vdwg.mxu0
  %v1455 = vmax.f32 %v1404, 0.0
  %v1456 = vmax.f32 %v1406, 0.0
  %v1457 = vmax.f32 %v1447, 0.0
  %v1458 = vmax.f32 %v1449, 0.0
  %v1459 = vmax.f32 %v1408, 0.0
  %v1460 = vmax.f32 %v1410, 0.0
  %v1461 = vmax.f32 %v1451, 0.0
  %v1462 = vmax.f32 %v1453, 0.0
  %1463 = vst [vmem:[#allocation2] sm:$0xff] %v1455
  %1464 = vst [vmem:[#allocation2 + $0x8] sm:$0xff] %v1456
  %1465 = vst [vmem:[#allocation2 + $0x10] sm:$0xff] %v1457
  %1466 = vst [vmem:[#allocation2 + $0x18] sm:$0xff] %v1458
  %1467 = vst [vmem:[#allocation2 + $0x20] sm:$0xff] %v1459
  %1468 = vst [vmem:[#allocation2 + $0x28] sm:$0xff] %v1460
  %1469 = vst [vmem:[#allocation2 + $0x30] sm:$0xff] %v1461
  %1470 = vst [vmem:[#allocation2 + $0x38] sm:$0xff] %v1462
  %v1471 = vld [vmem:[#allocation2] sm:$0xff]
  %v1472 = vld [vmem:[#allocation2 + $0x8] sm:$0xff]
  %v1473 = vld [vmem:[#allocation2 + $0x10] sm:$0xff]
  %v1474 = vld [vmem:[#allocation2 + $0x18] sm:$0xff]
  %v1475 = vld [vmem:[#allocation2 + $0x20] sm:$0xff]
  %v1476 = vld [vmem:[#allocation2 + $0x28] sm:$0xff]
  %v1477 = vld [vmem:[#allocation2 + $0x30] sm:$0xff]
  %v1478 = vld [vmem:[#allocation2 + $0x38] sm:$0xff]
  %1479 = vrot.lane.b32.xlu0 %v1471, 17
  %v1480 = vpop.permute.xlu0 %1479
  %1481 = vrot.lane.b32.xlu0 %v1475, 17
  %v1482 = vpop.permute.xlu0 %1481
  %1483 = vrot.lane.b32.xlu0 %v1472, 17
  %v1484 = vpop.permute.xlu0 %1483
  %1485 = vrot.lane.b32.xlu0 %v1476, 17
  %v1486 = vpop.permute.xlu0 %1485
  %1487 = vrot.lane.b32.xlu0 %v1473, 17
  %v1488 = vpop.permute.xlu0 %1487
  %1489 = vrot.lane.b32.xlu0 %v1477, 17
  %v1490 = vpop.permute.xlu0 %1489
  %1491 = vrot.lane.b32.xlu0 %v1474, 17
  %v1492 = vpop.permute.xlu0 %1491
  %1493 = vrot.lane.b32.xlu0 %v1478, 17
  %v1494 = vpop.permute.xlu0 %1493
  %v1495 = vsel %vm444, %v1488, %v1492
  %v1496 = vsel %vm444, %v1490, %v1494
  %v1497 = vsel %vm444, %v1484, %v1488
  %v1498 = vsel %vm444, %v1486, %v1490
  %v1499 = vsel %vm444, %v1480, %v1484
  %v1500 = vsel %vm444, %v1482, %v1486
  %v1501 = vsel %vm444, %v1492, %v1480
  %v1502 = vsel %vm444, %v1494, %v1482
  %v1503 = vld [vmem:[%s4] ss:$8 sm:$0xf]
  %v1505 = vlaneseq
  %v1506 = vshrl.u32 %v1505, 7
  %v1507 = vsub.s32 0, %v1506
  %v1508 = vrot.slane %v1503, %v1507
  %v1509 = vlaneseq
  %v1510 = vshrl.u32 %v1509, 7
  %v1511 = vsub.s32 1, %v1510
  %v1512 = vrot.slane %v1503, %v1511
  %v1513 = vlaneseq
  %v1514 = vshrl.u32 %v1513, 7
  %v1515 = vsub.s32 2, %v1514
  %v1516 = vrot.slane %v1503, %v1515
  %v1517 = vlaneseq
  %v1518 = vshrl.u32 %v1517, 7
  %v1519 = vsub.s32 3, %v1518
  %v1520 = vrot.slane %v1503, %v1519
  %v1525 = vmul.f32 %v1501, %v1508
  %v1526 = vmul.f32 %v1499, %v1512
  %v1527 = vmul.f32 %v1497, %v1516
  %v1528 = vmul.f32 %v1495, %v1520
  %v1529 = vmul.f32 %v1502, %v1508
  %v1530 = vmul.f32 %v1500, %v1512
  %v1531 = vmul.f32 %v1498, %v1516
  %v1532 = vmul.f32 %v1496, %v1520
  %v1533 = vpack.c.bf16 %v1529, %v1525
  %v1534 = vpack.c.bf16 %v1530, %v1526
  %v1535 = vpack.c.bf16 %v1531, %v1527
  %v1536 = vpack.c.bf16 %v1532, %v1528
  %v1541 = vunpack.c.l.b16 %v1533
  %v1542 = vunpack.c.l.b16 %v1534
  %v1543 = vunpack.c.l.b16 %v1535
  %v1544 = vunpack.c.l.b16 %v1536
  %v1545 = vunpack.c.h.b16 %v1533
  %v1546 = vunpack.c.h.b16 %v1534
  %v1547 = vunpack.c.h.b16 %v1535
  %v1548 = vunpack.c.h.b16 %v1536
  %v1549 = vpack.c.b16 %v1542, %v1541
  %v1550 = vpack.c.b16 %v1544, %v1543
  %v1551 = vpack.c.b16 %v1546, %v1545
  %v1552 = vpack.c.b16 %v1548, %v1547
  %1557 = vst [vmem:[#allocation3] sm:$0xff] %v1549
  %1558 = vst [vmem:[#allocation3 + $0x8] sm:$0xff] %v1550
  %1559 = vst [vmem:[#allocation3 + $0x10] sm:$0xff] %v1551
  %1560 = vst [vmem:[#allocation3 + $0x18] sm:$0xff] %v1552
  %1561 = vrot.lane.b32.xlu0 %v1471, 16
  %v1562 = vpop.permute.xlu0 %1561
  %1563 = vrot.lane.b32.xlu0 %v1475, 16
  %v1564 = vpop.permute.xlu0 %1563
  %1565 = vrot.lane.b32.xlu0 %v1472, 16
  %v1566 = vpop.permute.xlu0 %1565
  %1567 = vrot.lane.b32.xlu0 %v1476, 16
  %v1568 = vpop.permute.xlu0 %1567
  %1569 = vrot.lane.b32.xlu0 %v1473, 16
  %v1570 = vpop.permute.xlu0 %1569
  %1571 = vrot.lane.b32.xlu0 %v1477, 16
  %v1572 = vpop.permute.xlu0 %1571
  %1573 = vrot.lane.b32.xlu0 %v1474, 16
  %v1574 = vpop.permute.xlu0 %1573
  %1575 = vrot.lane.b32.xlu0 %v1478, 16
  %v1576 = vpop.permute.xlu0 %1575
  %v1577 = vsel %vm527, %v1570, %v1574
  %v1578 = vsel %vm527, %v1572, %v1576
  %v1579 = vsel %vm527, %v1566, %v1570
  %v1580 = vsel %vm527, %v1568, %v1572
  %v1581 = vsel %vm527, %v1562, %v1566
  %v1582 = vsel %vm527, %v1564, %v1568
  %v1583 = vsel %vm527, %v1574, %v1562
  %v1584 = vsel %vm527, %v1576, %v1564
  %v1585 = vld [vmem:[%s536] ss:$8 sm:$0xf]
  %v1587 = vlaneseq
  %v1588 = vshrl.u32 %v1587, 7
  %v1589 = vsub.s32 0, %v1588
  %v1590 = vrot.slane %v1585, %v1589
  %v1591 = vlaneseq
  %v1592 = vshrl.u32 %v1591, 7
  %v1593 = vsub.s32 1, %v1592
  %v1594 = vrot.slane %v1585, %v1593
  %v1595 = vlaneseq
  %v1596 = vshrl.u32 %v1595, 7
  %v1597 = vsub.s32 2, %v1596
  %v1598 = vrot.slane %v1585, %v1597
  %v1599 = vlaneseq
  %v1600 = vshrl.u32 %v1599, 7
  %v1601 = vsub.s32 3, %v1600
  %v1602 = vrot.slane %v1585, %v1601
  %v1607 = vmul.f32 %v1583, %v1590
  %v1608 = vmul.f32 %v1581, %v1594
  %v1609 = vmul.f32 %v1579, %v1598
  %v1610 = vmul.f32 %v1577, %v1602
  %v1611 = vmul.f32 %v1584, %v1590
  %v1612 = vmul.f32 %v1582, %v1594
  %v1613 = vmul.f32 %v1580, %v1598
  %v1614 = vmul.f32 %v1578, %v1602
  %v1615 = vpack.c.bf16 %v1611, %v1607
  %v1616 = vpack.c.bf16 %v1612, %v1608
  %v1617 = vpack.c.bf16 %v1613, %v1609
  %v1618 = vpack.c.bf16 %v1614, %v1610
  %v1623 = vunpack.c.l.b16 %v1615
  %v1624 = vunpack.c.l.b16 %v1616
  %v1625 = vunpack.c.l.b16 %v1617
  %v1626 = vunpack.c.l.b16 %v1618
  %v1627 = vunpack.c.h.b16 %v1615
  %v1628 = vunpack.c.h.b16 %v1616
  %v1629 = vunpack.c.h.b16 %v1617
  %v1630 = vunpack.c.h.b16 %v1618
  %v1631 = vpack.c.b16 %v1624, %v1623
  %v1632 = vpack.c.b16 %v1626, %v1625
  %v1633 = vpack.c.b16 %v1628, %v1627
  %v1634 = vpack.c.b16 %v1630, %v1629
  %1639 = vst [vmem:[#allocation3 + $0x20] sm:$0xff] %v1631
  %1640 = vst [vmem:[#allocation3 + $0x28] sm:$0xff] %v1632
  %1641 = vst [vmem:[#allocation3 + $0x30] sm:$0xff] %v1633
  %1642 = vst [vmem:[#allocation3 + $0x38] sm:$0xff] %v1634
  %1643 = vrot.lane.b32.xlu0 %v1471, 15
  %v1644 = vpop.permute.xlu0 %1643
  %1645 = vrot.lane.b32.xlu0 %v1475, 15
  %v1646 = vpop.permute.xlu0 %1645
  %1647 = vrot.lane.b32.xlu0 %v1472, 15
  %v1648 = vpop.permute.xlu0 %1647
  %1649 = vrot.lane.b32.xlu0 %v1476, 15
  %v1650 = vpop.permute.xlu0 %1649
  %1651 = vrot.lane.b32.xlu0 %v1473, 15
  %v1652 = vpop.permute.xlu0 %1651
  %1653 = vrot.lane.b32.xlu0 %v1477, 15
  %v1654 = vpop.permute.xlu0 %1653
  %1655 = vrot.lane.b32.xlu0 %v1474, 15
  %v1656 = vpop.permute.xlu0 %1655
  %1657 = vrot.lane.b32.xlu0 %v1478, 15
  %v1658 = vpop.permute.xlu0 %1657
  %v1659 = vsel %vm611, %v1652, %v1656
  %v1660 = vsel %vm611, %v1654, %v1658
  %v1661 = vsel %vm611, %v1648, %v1652
  %v1662 = vsel %vm611, %v1650, %v1654
  %v1663 = vsel %vm611, %v1644, %v1648
  %v1664 = vsel %vm611, %v1646, %v1650
  %v1665 = vsel %vm611, %v1656, %v1644
  %v1666 = vsel %vm611, %v1658, %v1646
  %v1667 = vld [vmem:[%s620] ss:$8 sm:$0xf]
  %v1669 = vlaneseq
  %v1670 = vshrl.u32 %v1669, 7
  %v1671 = vsub.s32 0, %v1670
  %v1672 = vrot.slane %v1667, %v1671
  %v1673 = vlaneseq
  %v1674 = vshrl.u32 %v1673, 7
  %v1675 = vsub.s32 1, %v1674
  %v1676 = vrot.slane %v1667, %v1675
  %v1677 = vlaneseq
  %v1678 = vshrl.u32 %v1677, 7
  %v1679 = vsub.s32 2, %v1678
  %v1680 = vrot.slane %v1667, %v1679
  %v1681 = vlaneseq
  %v1682 = vshrl.u32 %v1681, 7
  %v1683 = vsub.s32 3, %v1682
  %v1684 = vrot.slane %v1667, %v1683
  %v1689 = vmul.f32 %v1665, %v1672
  %v1690 = vmul.f32 %v1663, %v1676
  %v1691 = vmul.f32 %v1661, %v1680
  %v1692 = vmul.f32 %v1659, %v1684
  %v1693 = vmul.f32 %v1666, %v1672
  %v1694 = vmul.f32 %v1664, %v1676
  %v1695 = vmul.f32 %v1662, %v1680
  %v1696 = vmul.f32 %v1660, %v1684
  %v1697 = vpack.c.bf16 %v1693, %v1689
  %v1698 = vpack.c.bf16 %v1694, %v1690
  %v1699 = vpack.c.bf16 %v1695, %v1691
  %v1700 = vpack.c.bf16 %v1696, %v1692
  %v1705 = vunpack.c.l.b16 %v1697
  %v1706 = vunpack.c.l.b16 %v1698
  %v1707 = vunpack.c.l.b16 %v1699
  %v1708 = vunpack.c.l.b16 %v1700
  %v1709 = vunpack.c.h.b16 %v1697
  %v1710 = vunpack.c.h.b16 %v1698
  %v1711 = vunpack.c.h.b16 %v1699
  %v1712 = vunpack.c.h.b16 %v1700
  %v1713 = vpack.c.b16 %v1706, %v1705
  %v1714 = vpack.c.b16 %v1708, %v1707
  %v1715 = vpack.c.b16 %v1710, %v1709
  %v1716 = vpack.c.b16 %v1712, %v1711
  %1721 = vst [vmem:[#allocation3 + $0x40] sm:$0xff] %v1713
  %1722 = vst [vmem:[#allocation3 + $0x48] sm:$0xff] %v1714
  %1723 = vst [vmem:[#allocation3 + $0x50] sm:$0xff] %v1715
  %1724 = vst [vmem:[#allocation3 + $0x58] sm:$0xff] %v1716
  %1725 = vrot.lane.b32.xlu0 %v1471, 1
  %v1726 = vpop.permute.xlu0 %1725
  %1727 = vrot.lane.b32.xlu0 %v1475, 1
  %v1728 = vpop.permute.xlu0 %1727
  %1729 = vrot.lane.b32.xlu0 %v1472, 1
  %v1730 = vpop.permute.xlu0 %1729
  %1731 = vrot.lane.b32.xlu0 %v1476, 1
  %v1732 = vpop.permute.xlu0 %1731
  %1733 = vrot.lane.b32.xlu0 %v1473, 1
  %v1734 = vpop.permute.xlu0 %1733
  %1735 = vrot.lane.b32.xlu0 %v1477, 1
  %v1736 = vpop.permute.xlu0 %1735
  %1737 = vrot.lane.b32.xlu0 %v1474, 1
  %v1738 = vpop.permute.xlu0 %1737
  %1739 = vrot.lane.b32.xlu0 %v1478, 1
  %v1740 = vpop.permute.xlu0 %1739
  %v1741 = vsel %vm695, %v1734, %v1738
  %v1742 = vsel %vm695, %v1736, %v1740
  %v1743 = vsel %vm695, %v1730, %v1734
  %v1744 = vsel %vm695, %v1732, %v1736
  %v1745 = vsel %vm695, %v1726, %v1730
  %v1746 = vsel %vm695, %v1728, %v1732
  %v1747 = vsel %vm695, %v1738, %v1726
  %v1748 = vsel %vm695, %v1740, %v1728
  %v1749 = vld [vmem:[%s704] ss:$8 sm:$0xf]
  %v1751 = vlaneseq
  %v1752 = vshrl.u32 %v1751, 7
  %v1753 = vsub.s32 0, %v1752
  %v1754 = vrot.slane %v1749, %v1753
  %v1755 = vlaneseq
  %v1756 = vshrl.u32 %v1755, 7
  %v1757 = vsub.s32 1, %v1756
  %v1758 = vrot.slane %v1749, %v1757
  %v1759 = vlaneseq
  %v1760 = vshrl.u32 %v1759, 7
  %v1761 = vsub.s32 2, %v1760
  %v1762 = vrot.slane %v1749, %v1761
  %v1763 = vlaneseq
  %v1764 = vshrl.u32 %v1763, 7
  %v1765 = vsub.s32 3, %v1764
  %v1766 = vrot.slane %v1749, %v1765
  %v1771 = vmul.f32 %v1747, %v1754
  %v1772 = vmul.f32 %v1745, %v1758
  %v1773 = vmul.f32 %v1743, %v1762
  %v1774 = vmul.f32 %v1741, %v1766
  %v1775 = vmul.f32 %v1748, %v1754
  %v1776 = vmul.f32 %v1746, %v1758
  %v1777 = vmul.f32 %v1744, %v1762
  %v1778 = vmul.f32 %v1742, %v1766
  %v1779 = vpack.c.bf16 %v1775, %v1771
  %v1780 = vpack.c.bf16 %v1776, %v1772
  %v1781 = vpack.c.bf16 %v1777, %v1773
  %v1782 = vpack.c.bf16 %v1778, %v1774
  %v1787 = vunpack.c.l.b16 %v1779
  %v1788 = vunpack.c.l.b16 %v1780
  %v1789 = vunpack.c.l.b16 %v1781
  %v1790 = vunpack.c.l.b16 %v1782
  %v1791 = vunpack.c.h.b16 %v1779
  %v1792 = vunpack.c.h.b16 %v1780
  %v1793 = vunpack.c.h.b16 %v1781
  %v1794 = vunpack.c.h.b16 %v1782
  %v1795 = vpack.c.b16 %v1788, %v1787
  %v1796 = vpack.c.b16 %v1790, %v1789
  %v1797 = vpack.c.b16 %v1792, %v1791
  %v1798 = vpack.c.b16 %v1794, %v1793
  %1803 = vst [vmem:[#allocation3 + $0x60] sm:$0xff] %v1795
  %1804 = vst [vmem:[#allocation3 + $0x68] sm:$0xff] %v1796
  %1805 = vst [vmem:[#allocation3 + $0x70] sm:$0xff] %v1797
  %1806 = vst [vmem:[#allocation3 + $0x78] sm:$0xff] %v1798
  %v1807 = vpack.c.bf16 %v1475, %v1471
  %v1808 = vpack.c.bf16 %v1476, %v1472
  %v1809 = vpack.c.bf16 %v1477, %v1473
  %v1810 = vpack.c.bf16 %v1478, %v1474
  %v1815 = vunpack.c.l.b16 %v1807
  %v1816 = vunpack.c.l.b16 %v1808
  %v1817 = vunpack.c.l.b16 %v1809
  %v1818 = vunpack.c.l.b16 %v1810
  %v1819 = vunpack.c.h.b16 %v1807
  %v1820 = vunpack.c.h.b16 %v1808
  %v1821 = vunpack.c.h.b16 %v1809
  %v1822 = vunpack.c.h.b16 %v1810
  %v1823 = vpack.c.b16 %v1816, %v1815
  %v1824 = vpack.c.b16 %v1818, %v1817
  %v1825 = vpack.c.b16 %v1820, %v1819
  %v1826 = vpack.c.b16 %v1822, %v1821
  %1831 = vst [vmem:[#allocation3 + $0x80] sm:$0xff] %v1823
  %1832 = vst [vmem:[#allocation3 + $0x88] sm:$0xff] %v1824
  %1833 = vst [vmem:[#allocation3 + $0x90] sm:$0xff] %v1825
  %1834 = vst [vmem:[#allocation3 + $0x98] sm:$0xff] %v1826
  %1835 = vrot.lane.b32.xlu0 %v1471, 127
  %v1836 = vpop.permute.xlu0 %1835
  %1837 = vrot.lane.b32.xlu0 %v1475, 127
  %v1838 = vpop.permute.xlu0 %1837
  %1839 = vrot.lane.b32.xlu0 %v1472, 127
  %v1840 = vpop.permute.xlu0 %1839
  %1841 = vrot.lane.b32.xlu0 %v1476, 127
  %v1842 = vpop.permute.xlu0 %1841
  %1843 = vrot.lane.b32.xlu0 %v1473, 127
  %v1844 = vpop.permute.xlu0 %1843
  %1845 = vrot.lane.b32.xlu0 %v1477, 127
  %v1846 = vpop.permute.xlu0 %1845
  %1847 = vrot.lane.b32.xlu0 %v1474, 127
  %v1848 = vpop.permute.xlu0 %1847
  %1849 = vrot.lane.b32.xlu0 %v1478, 127
  %v1850 = vpop.permute.xlu0 %1849
  %v1851 = vsel %vm807, %v1844, %v1848
  %v1852 = vsel %vm807, %v1846, %v1850
  %v1853 = vsel %vm807, %v1840, %v1844
  %v1854 = vsel %vm807, %v1842, %v1846
  %v1855 = vsel %vm807, %v1836, %v1840
  %v1856 = vsel %vm807, %v1838, %v1842
  %v1857 = vsel %vm807, %v1848, %v1836
  %v1858 = vsel %vm807, %v1850, %v1838
  %v1859 = vld [vmem:[%s816] ss:$8 sm:$0xf]
  %v1861 = vlaneseq
  %v1862 = vshrl.u32 %v1861, 7
  %v1863 = vsub.s32 0, %v1862
  %v1864 = vrot.slane %v1859, %v1863
  %v1865 = vlaneseq
  %v1866 = vshrl.u32 %v1865, 7
  %v1867 = vsub.s32 1, %v1866
  %v1868 = vrot.slane %v1859, %v1867
  %v1869 = vlaneseq
  %v1870 = vshrl.u32 %v1869, 7
  %v1871 = vsub.s32 2, %v1870
  %v1872 = vrot.slane %v1859, %v1871
  %v1873 = vlaneseq
  %v1874 = vshrl.u32 %v1873, 7
  %v1875 = vsub.s32 3, %v1874
  %v1876 = vrot.slane %v1859, %v1875
  %v1881 = vmul.f32 %v1855, %v1864
  %v1882 = vmul.f32 %v1853, %v1868
  %v1883 = vmul.f32 %v1851, %v1872
  %v1884 = vmul.f32 %v1857, %v1876
  %v1885 = vmul.f32 %v1856, %v1864
  %v1886 = vmul.f32 %v1854, %v1868
  %v1887 = vmul.f32 %v1852, %v1872
  %v1888 = vmul.f32 %v1858, %v1876
  %v1889 = vpack.c.bf16 %v1885, %v1881
  %v1890 = vpack.c.bf16 %v1886, %v1882
  %v1891 = vpack.c.bf16 %v1887, %v1883
  %v1892 = vpack.c.bf16 %v1888, %v1884
  %v1897 = vunpack.c.l.b16 %v1889
  %v1898 = vunpack.c.l.b16 %v1890
  %v1899 = vunpack.c.l.b16 %v1891
  %v1900 = vunpack.c.l.b16 %v1892
  %v1901 = vunpack.c.h.b16 %v1889
  %v1902 = vunpack.c.h.b16 %v1890
  %v1903 = vunpack.c.h.b16 %v1891
  %v1904 = vunpack.c.h.b16 %v1892
  %v1905 = vpack.c.b16 %v1898, %v1897
  %v1906 = vpack.c.b16 %v1900, %v1899
  %v1907 = vpack.c.b16 %v1902, %v1901
  %v1908 = vpack.c.b16 %v1904, %v1903
  %1913 = vst [vmem:[#allocation3 + $0xa0] sm:$0xff] %v1905
  %1914 = vst [vmem:[#allocation3 + $0xa8] sm:$0xff] %v1906
  %1915 = vst [vmem:[#allocation3 + $0xb0] sm:$0xff] %v1907
  %1916 = vst [vmem:[#allocation3 + $0xb8] sm:$0xff] %v1908
  %1917 = vrot.lane.b32.xlu0 %v1471, 113
  %v1918 = vpop.permute.xlu0 %1917
  %1919 = vrot.lane.b32.xlu0 %v1475, 113
  %v1920 = vpop.permute.xlu0 %1919
  %1921 = vrot.lane.b32.xlu0 %v1472, 113
  %v1922 = vpop.permute.xlu0 %1921
  %1923 = vrot.lane.b32.xlu0 %v1476, 113
  %v1924 = vpop.permute.xlu0 %1923
  %1925 = vrot.lane.b32.xlu0 %v1473, 113
  %v1926 = vpop.permute.xlu0 %1925
  %1927 = vrot.lane.b32.xlu0 %v1477, 113
  %v1928 = vpop.permute.xlu0 %1927
  %1929 = vrot.lane.b32.xlu0 %v1474, 113
  %v1930 = vpop.permute.xlu0 %1929
  %1931 = vrot.lane.b32.xlu0 %v1478, 113
  %v1932 = vpop.permute.xlu0 %1931
  %v1933 = vsel %vm891, %v1926, %v1930
  %v1934 = vsel %vm891, %v1928, %v1932
  %v1935 = vsel %vm891, %v1922, %v1926
  %v1936 = vsel %vm891, %v1924, %v1928
  %v1937 = vsel %vm891, %v1918, %v1922
  %v1938 = vsel %vm891, %v1920, %v1924
  %v1939 = vsel %vm891, %v1930, %v1918
  %v1940 = vsel %vm891, %v1932, %v1920
  %v1941 = vld [vmem:[%s900] ss:$8 sm:$0xf]
  %v1943 = vlaneseq
  %v1944 = vshrl.u32 %v1943, 7
  %v1945 = vsub.s32 0, %v1944
  %v1946 = vrot.slane %v1941, %v1945
  %v1947 = vlaneseq
  %v1948 = vshrl.u32 %v1947, 7
  %v1949 = vsub.s32 1, %v1948
  %v1950 = vrot.slane %v1941, %v1949
  %v1951 = vlaneseq
  %v1952 = vshrl.u32 %v1951, 7
  %v1953 = vsub.s32 2, %v1952
  %v1954 = vrot.slane %v1941, %v1953
  %v1955 = vlaneseq
  %v1956 = vshrl.u32 %v1955, 7
  %v1957 = vsub.s32 3, %v1956
  %v1958 = vrot.slane %v1941, %v1957
  %v1963 = vmul.f32 %v1937, %v1946
  %v1964 = vmul.f32 %v1935, %v1950
  %v1965 = vmul.f32 %v1933, %v1954
  %v1966 = vmul.f32 %v1939, %v1958
  %v1967 = vmul.f32 %v1938, %v1946
  %v1968 = vmul.f32 %v1936, %v1950
  %v1969 = vmul.f32 %v1934, %v1954
  %v1970 = vmul.f32 %v1940, %v1958
  %v1971 = vpack.c.bf16 %v1967, %v1963
  %v1972 = vpack.c.bf16 %v1968, %v1964
  %v1973 = vpack.c.bf16 %v1969, %v1965
  %v1974 = vpack.c.bf16 %v1970, %v1966
  %v1979 = vunpack.c.l.b16 %v1971
  %v1980 = vunpack.c.l.b16 %v1972
  %v1981 = vunpack.c.l.b16 %v1973
  %v1982 = vunpack.c.l.b16 %v1974
  %v1983 = vunpack.c.h.b16 %v1971
  %v1984 = vunpack.c.h.b16 %v1972
  %v1985 = vunpack.c.h.b16 %v1973
  %v1986 = vunpack.c.h.b16 %v1974
  %v1987 = vpack.c.b16 %v1980, %v1979
  %v1988 = vpack.c.b16 %v1982, %v1981
  %v1989 = vpack.c.b16 %v1984, %v1983
  %v1990 = vpack.c.b16 %v1986, %v1985
  %1995 = vst [vmem:[#allocation3 + $0xc0] sm:$0xff] %v1987
  %1996 = vst [vmem:[#allocation3 + $0xc8] sm:$0xff] %v1988
  %1997 = vst [vmem:[#allocation3 + $0xd0] sm:$0xff] %v1989
  %1998 = vst [vmem:[#allocation3 + $0xd8] sm:$0xff] %v1990
  %1999 = vrot.lane.b32.xlu0 %v1471, 112
  %v2000 = vpop.permute.xlu0 %1999
  %2001 = vrot.lane.b32.xlu0 %v1475, 112
  %v2002 = vpop.permute.xlu0 %2001
  %2003 = vrot.lane.b32.xlu0 %v1472, 112
  %v2004 = vpop.permute.xlu0 %2003
  %2005 = vrot.lane.b32.xlu0 %v1476, 112
  %v2006 = vpop.permute.xlu0 %2005
  %2007 = vrot.lane.b32.xlu0 %v1473, 112
  %v2008 = vpop.permute.xlu0 %2007
  %2009 = vrot.lane.b32.xlu0 %v1477, 112
  %v2010 = vpop.permute.xlu0 %2009
  %2011 = vrot.lane.b32.xlu0 %v1474, 112
  %v2012 = vpop.permute.xlu0 %2011
  %2013 = vrot.lane.b32.xlu0 %v1478, 112
  %v2014 = vpop.permute.xlu0 %2013
  %v2015 = vsel %vm975, %v2008, %v2012
  %v2016 = vsel %vm975, %v2010, %v2014
  %v2017 = vsel %vm975, %v2004, %v2008
  %v2018 = vsel %vm975, %v2006, %v2010
  %v2019 = vsel %vm975, %v2000, %v2004
  %v2020 = vsel %vm975, %v2002, %v2006
  %v2021 = vsel %vm975, %v2012, %v2000
  %v2022 = vsel %vm975, %v2014, %v2002
  %v2023 = vld [vmem:[%s984] ss:$8 sm:$0xf]
  %v2025 = vlaneseq
  %v2026 = vshrl.u32 %v2025, 7
  %v2027 = vsub.s32 0, %v2026
  %v2028 = vrot.slane %v2023, %v2027
  %v2029 = vlaneseq
  %v2030 = vshrl.u32 %v2029, 7
  %v2031 = vsub.s32 1, %v2030
  %v2032 = vrot.slane %v2023, %v2031
  %v2033 = vlaneseq
  %v2034 = vshrl.u32 %v2033, 7
  %v2035 = vsub.s32 2, %v2034
  %v2036 = vrot.slane %v2023, %v2035
  %v2037 = vlaneseq
  %v2038 = vshrl.u32 %v2037, 7
  %v2039 = vsub.s32 3, %v2038
  %v2040 = vrot.slane %v2023, %v2039
  %v2045 = vmul.f32 %v2019, %v2028
  %v2046 = vmul.f32 %v2017, %v2032
  %v2047 = vmul.f32 %v2015, %v2036
  %v2048 = vmul.f32 %v2021, %v2040
  %v2049 = vmul.f32 %v2020, %v2028
  %v2050 = vmul.f32 %v2018, %v2032
  %v2051 = vmul.f32 %v2016, %v2036
  %v2052 = vmul.f32 %v2022, %v2040
  %v2053 = vpack.c.bf16 %v2049, %v2045
  %v2054 = vpack.c.bf16 %v2050, %v2046
  %v2055 = vpack.c.bf16 %v2051, %v2047
  %v2056 = vpack.c.bf16 %v2052, %v2048
  %v2061 = vunpack.c.l.b16 %v2053
  %v2062 = vunpack.c.l.b16 %v2054
  %v2063 = vunpack.c.l.b16 %v2055
  %v2064 = vunpack.c.l.b16 %v2056
  %v2065 = vunpack.c.h.b16 %v2053
  %v2066 = vunpack.c.h.b16 %v2054
  %v2067 = vunpack.c.h.b16 %v2055
  %v2068 = vunpack.c.h.b16 %v2056
  %v2069 = vpack.c.b16 %v2062, %v2061
  %v2070 = vpack.c.b16 %v2064, %v2063
  %v2071 = vpack.c.b16 %v2066, %v2065
  %v2072 = vpack.c.b16 %v2068, %v2067
  %2077 = vst [vmem:[#allocation3 + $0xe0] sm:$0xff] %v2069
  %2078 = vst [vmem:[#allocation3 + $0xe8] sm:$0xff] %v2070
  %2079 = vst [vmem:[#allocation3 + $0xf0] sm:$0xff] %v2071
  %2080 = vst [vmem:[#allocation3 + $0xf8] sm:$0xff] %v2072
  %2081 = vrot.lane.b32.xlu0 %v1471, 111
  %v2082 = vpop.permute.xlu0 %2081
  %2083 = vrot.lane.b32.xlu0 %v1475, 111
  %v2084 = vpop.permute.xlu0 %2083
  %2085 = vrot.lane.b32.xlu0 %v1472, 111
  %v2086 = vpop.permute.xlu0 %2085
  %2087 = vrot.lane.b32.xlu0 %v1476, 111
  %v2088 = vpop.permute.xlu0 %2087
  %2089 = vrot.lane.b32.xlu0 %v1473, 111
  %v2090 = vpop.permute.xlu0 %2089
  %2091 = vrot.lane.b32.xlu0 %v1477, 111
  %v2092 = vpop.permute.xlu0 %2091
  %2093 = vrot.lane.b32.xlu0 %v1474, 111
  %v2094 = vpop.permute.xlu0 %2093
  %2095 = vrot.lane.b32.xlu0 %v1478, 111
  %v2096 = vpop.permute.xlu0 %2095
  %v2097 = vsel %vm1059, %v2090, %v2094
  %v2098 = vsel %vm1059, %v2092, %v2096
  %v2099 = vsel %vm1059, %v2086, %v2090
  %v2100 = vsel %vm1059, %v2088, %v2092
  %v2101 = vsel %vm1059, %v2082, %v2086
  %v2102 = vsel %vm1059, %v2084, %v2088
  %v2103 = vsel %vm1059, %v2094, %v2082
  %v2104 = vsel %vm1059, %v2096, %v2084
  %v2105 = vld [vmem:[%s1068] ss:$8 sm:$0xf]
  %v2107 = vlaneseq
  %v2108 = vshrl.u32 %v2107, 7
  %v2109 = vsub.s32 0, %v2108
  %v2110 = vrot.slane %v2105, %v2109
  %v2111 = vlaneseq
  %v2112 = vshrl.u32 %v2111, 7
  %v2113 = vsub.s32 1, %v2112
  %v2114 = vrot.slane %v2105, %v2113
  %v2115 = vlaneseq
  %v2116 = vshrl.u32 %v2115, 7
  %v2117 = vsub.s32 2, %v2116
  %v2118 = vrot.slane %v2105, %v2117
  %v2119 = vlaneseq
  %v2120 = vshrl.u32 %v2119, 7
  %v2121 = vsub.s32 3, %v2120
  %v2122 = vrot.slane %v2105, %v2121
  %v2127 = vmul.f32 %v2101, %v2110
  %v2128 = vmul.f32 %v2099, %v2114
  %v2129 = vmul.f32 %v2097, %v2118
  %v2130 = vmul.f32 %v2103, %v2122
  %v2131 = vmul.f32 %v2102, %v2110
  %v2132 = vmul.f32 %v2100, %v2114
  %v2133 = vmul.f32 %v2098, %v2118
  %v2134 = vmul.f32 %v2104, %v2122
  %v2135 = vpack.c.bf16 %v2131, %v2127
  %v2136 = vpack.c.bf16 %v2132, %v2128
  %v2137 = vpack.c.bf16 %v2133, %v2129
  %v2138 = vpack.c.bf16 %v2134, %v2130
  %v2143 = vunpack.c.l.b16 %v2135
  %v2144 = vunpack.c.l.b16 %v2136
  %v2145 = vunpack.c.l.b16 %v2137
  %v2146 = vunpack.c.l.b16 %v2138
  %v2147 = vunpack.c.h.b16 %v2135
  %v2148 = vunpack.c.h.b16 %v2136
  %v2149 = vunpack.c.h.b16 %v2137
  %v2150 = vunpack.c.h.b16 %v2138
  %v2151 = vpack.c.b16 %v2144, %v2143
  %v2152 = vpack.c.b16 %v2146, %v2145
  %v2153 = vpack.c.b16 %v2148, %v2147
  %v2154 = vpack.c.b16 %v2150, %v2149
  %2159 = vst [vmem:[#allocation3 + $0x100] sm:$0xff] %v2151
  %2160 = vst [vmem:[#allocation3 + $0x108] sm:$0xff] %v2152
  %2161 = vst [vmem:[#allocation3 + $0x110] sm:$0xff] %v2153
  %2162 = vst [vmem:[#allocation3 + $0x118] sm:$0xff] %v2154
  %v2163 = vld [vmem:[%s7] sm:$0xff]
  %v2164 = vld [vmem:[%s7 + $0x8] sm:$0xff]
  %v2165 = vld [vmem:[#allocation3] sm:$0xff]
  %v2166 = vld [vmem:[#allocation3 + $0x8] sm:$0xff]
  %v2167 = vld [vmem:[#allocation3 + $0x10] sm:$0xff]
  %v2168 = vld [vmem:[#allocation3 + $0x18] sm:$0xff]
  %v2169 = vld [vmem:[#allocation3 + $0x20] sm:$0xff]
  %v2170 = vld [vmem:[#allocation3 + $0x28] sm:$0xff]
  %v2171 = vld [vmem:[#allocation3 + $0x30] sm:$0xff]
  %v2172 = vld [vmem:[#allocation3 + $0x38] sm:$0xff]
  %v2173 = vld [vmem:[#allocation3 + $0x40] sm:$0xff]
  %v2174 = vld [vmem:[#allocation3 + $0x48] sm:$0xff]
  %v2175 = vld [vmem:[#allocation3 + $0x50] sm:$0xff]
  %v2176 = vld [vmem:[#allocation3 + $0x58] sm:$0xff]
  %v2177 = vld [vmem:[#allocation3 + $0x60] sm:$0xff]
  %v2178 = vld [vmem:[#allocation3 + $0x68] sm:$0xff]
  %v2179 = vld [vmem:[#allocation3 + $0x70] sm:$0xff]
  %v2180 = vld [vmem:[#allocation3 + $0x78] sm:$0xff]
  %v2181 = vld [vmem:[#allocation3 + $0x80] sm:$0xff]
  %v2182 = vld [vmem:[#allocation3 + $0x88] sm:$0xff]
  %v2183 = vld [vmem:[#allocation3 + $0x90] sm:$0xff]
  %v2184 = vld [vmem:[#allocation3 + $0x98] sm:$0xff]
  %v2185 = vld [vmem:[#allocation3 + $0xa0] sm:$0xff]
  %v2186 = vld [vmem:[#allocation3 + $0xa8] sm:$0xff]
  %v2187 = vld [vmem:[#allocation3 + $0xb0] sm:$0xff]
  %v2188 = vld [vmem:[#allocation3 + $0xb8] sm:$0xff]
  %v2189 = vld [vmem:[#allocation3 + $0xc0] sm:$0xff]
  %v2190 = vld [vmem:[#allocation3 + $0xc8] sm:$0xff]
  %v2191 = vld [vmem:[#allocation3 + $0xd0] sm:$0xff]
  %v2192 = vld [vmem:[#allocation3 + $0xd8] sm:$0xff]
  %v2193 = vld [vmem:[#allocation3 + $0xe0] sm:$0xff]
  %v2194 = vld [vmem:[#allocation3 + $0xe8] sm:$0xff]
  %v2195 = vld [vmem:[#allocation3 + $0xf0] sm:$0xff]
  %v2196 = vld [vmem:[#allocation3 + $0xf8] sm:$0xff]
  %v2197 = vld [vmem:[#allocation3 + $0x100] sm:$0xff]
  %v2198 = vld [vmem:[#allocation3 + $0x108] sm:$0xff]
  %v2199 = vld [vmem:[#allocation3 + $0x110] sm:$0xff]
  %v2200 = vld [vmem:[#allocation3 + $0x118] sm:$0xff]
  %v2201 = vld [vmem:[%s8] sm:$0xff]
  %v2202 = vld [vmem:[%s8 + $0x8] sm:$0xff]
  %2204 = vset.pattern.permute.xlu0 0
  %2205 = vperm.xlu0 %2204, %v2201
  %v2206 = vpop.permute.xlu0 %2205
  %2209 = vset.pattern.permute.xlu0 0
  %2210 = vperm.xlu0 %2209, %v2202
  %v2211 = vpop.permute.xlu0 %2210
  %v2215 = vunpack.c.l.b16 %v2163
  %v2216 = vunpack.c.h.b16 %v2163
  %v2217 = vunpack.c.l.b16 %v2164
  %v2218 = vunpack.c.h.b16 %v2164
  %v2219 = vpack.c.b16 %v2217, %v2215
  %v2220 = vpack.c.b16 %v2218, %v2216
  %v2258 = vunpack.c.l.b16 %v2165
  %v2259 = vunpack.c.h.b16 %v2165
  %v2260 = vunpack.c.l.b16 %v2166
  %v2261 = vunpack.c.h.b16 %v2166
  %v2262 = vunpack.c.l.b16 %v2167
  %v2263 = vunpack.c.h.b16 %v2167
  %v2264 = vunpack.c.l.b16 %v2168
  %v2265 = vunpack.c.h.b16 %v2168
  %v2266 = vunpack.c.l.b16 %v2169
  %v2267 = vunpack.c.h.b16 %v2169
  %v2268 = vunpack.c.l.b16 %v2170
  %v2269 = vunpack.c.h.b16 %v2170
  %v2270 = vunpack.c.l.b16 %v2171
  %v2271 = vunpack.c.h.b16 %v2171
  %v2272 = vunpack.c.l.b16 %v2172
  %v2273 = vunpack.c.h.b16 %v2172
  %v2274 = vunpack.c.l.b16 %v2173
  %v2275 = vunpack.c.h.b16 %v2173
  %v2276 = vunpack.c.l.b16 %v2174
  %v2277 = vunpack.c.h.b16 %v2174
  %v2278 = vunpack.c.l.b16 %v2175
  %v2279 = vunpack.c.h.b16 %v2175
  %v2280 = vunpack.c.l.b16 %v2176
  %v2281 = vunpack.c.h.b16 %v2176
  %v2282 = vunpack.c.l.b16 %v2177
  %v2283 = vunpack.c.h.b16 %v2177
  %v2284 = vunpack.c.l.b16 %v2178
  %v2285 = vunpack.c.h.b16 %v2178
  %v2286 = vunpack.c.l.b16 %v2179
  %v2287 = vunpack.c.h.b16 %v2179
  %v2288 = vunpack.c.l.b16 %v2180
  %v2289 = vunpack.c.h.b16 %v2180
  %v2290 = vunpack.c.l.b16 %v2181
  %v2291 = vunpack.c.h.b16 %v2181
  %v2292 = vunpack.c.l.b16 %v2182
  %v2293 = vunpack.c.h.b16 %v2182
  %v2294 = vunpack.c.l.b16 %v2183
  %v2295 = vunpack.c.h.b16 %v2183
  %v2296 = vunpack.c.l.b16 %v2184
  %v2297 = vunpack.c.h.b16 %v2184
  %v2298 = vunpack.c.l.b16 %v2185
  %v2299 = vunpack.c.h.b16 %v2185
  %v2300 = vunpack.c.l.b16 %v2186
  %v2301 = vunpack.c.h.b16 %v2186
  %v2302 = vunpack.c.l.b16 %v2187
  %v2303 = vunpack.c.h.b16 %v2187
  %v2304 = vunpack.c.l.b16 %v2188
  %v2305 = vunpack.c.h.b16 %v2188
  %v2306 = vunpack.c.l.b16 %v2189
  %v2307 = vunpack.c.h.b16 %v2189
  %v2308 = vunpack.c.l.b16 %v2190
  %v2309 = vunpack.c.h.b16 %v2190
  %v2310 = vunpack.c.l.b16 %v2191
  %v2311 = vunpack.c.h.b16 %v2191
  %v2312 = vunpack.c.l.b16 %v2192
  %v2313 = vunpack.c.h.b16 %v2192
  %v2314 = vunpack.c.l.b16 %v2193
  %v2315 = vunpack.c.h.b16 %v2193
  %v2316 = vunpack.c.l.b16 %v2194
  %v2317 = vunpack.c.h.b16 %v2194
  %v2318 = vunpack.c.l.b16 %v2195
  %v2319 = vunpack.c.h.b16 %v2195
  %v2320 = vunpack.c.l.b16 %v2196
  %v2321 = vunpack.c.h.b16 %v2196
  %v2322 = vunpack.c.l.b16 %v2197
  %v2323 = vunpack.c.h.b16 %v2197
  %v2324 = vunpack.c.l.b16 %v2198
  %v2325 = vunpack.c.h.b16 %v2198
  %v2326 = vunpack.c.l.b16 %v2199
  %v2327 = vunpack.c.h.b16 %v2199
  %v2328 = vunpack.c.l.b16 %v2200
  %v2329 = vunpack.c.h.b16 %v2200
  %v2330 = vpack.c.b16 %v2262, %v2258
  %v2331 = vpack.c.b16 %v2263, %v2259
  %v2332 = vpack.c.b16 %v2264, %v2260
  %v2333 = vpack.c.b16 %v2265, %v2261
  %v2334 = vpack.c.b16 %v2270, %v2266
  %v2335 = vpack.c.b16 %v2271, %v2267
  %v2336 = vpack.c.b16 %v2272, %v2268
  %v2337 = vpack.c.b16 %v2273, %v2269
  %v2338 = vpack.c.b16 %v2278, %v2274
  %v2339 = vpack.c.b16 %v2279, %v2275
  %v2340 = vpack.c.b16 %v2280, %v2276
  %v2341 = vpack.c.b16 %v2281, %v2277
  %v2342 = vpack.c.b16 %v2286, %v2282
  %v2343 = vpack.c.b16 %v2287, %v2283
  %v2344 = vpack.c.b16 %v2288, %v2284
  %v2345 = vpack.c.b16 %v2289, %v2285
  %v2346 = vpack.c.b16 %v2294, %v2290
  %v2347 = vpack.c.b16 %v2295, %v2291
  %v2348 = vpack.c.b16 %v2296, %v2292
  %v2349 = vpack.c.b16 %v2297, %v2293
  %v2350 = vpack.c.b16 %v2302, %v2298
  %v2351 = vpack.c.b16 %v2303, %v2299
  %v2352 = vpack.c.b16 %v2304, %v2300
  %v2353 = vpack.c.b16 %v2305, %v2301
  %v2354 = vpack.c.b16 %v2310, %v2306
  %v2355 = vpack.c.b16 %v2311, %v2307
  %v2356 = vpack.c.b16 %v2312, %v2308
  %v2357 = vpack.c.b16 %v2313, %v2309
  %v2358 = vpack.c.b16 %v2318, %v2314
  %v2359 = vpack.c.b16 %v2319, %v2315
  %v2360 = vpack.c.b16 %v2320, %v2316
  %v2361 = vpack.c.b16 %v2321, %v2317
  %v2362 = vpack.c.b16 %v2326, %v2322
  %v2363 = vpack.c.b16 %v2327, %v2323
  %v2364 = vpack.c.b16 %v2328, %v2324
  %v2365 = vpack.c.b16 %v2329, %v2325
  %v2403 = vsel %vm145, %v2220, 0
  %2405 = vmatprep.subr.bf16.mxu0 %v2359
  %2406 = vmatpush1.bf16.msra.mxu0 %v2358
  %2407 = vmatprep.subr.bf16.mxu0 %v2355
  %2408 = vmatpush1.bf16.msra.mxu0 %v2354
  %2409 = vmatprep.subr.bf16.mxu0 %v2351
  %2410 = vmatpush1.bf16.msra.mxu0 %v2350
  %2411 = vmatprep.subr.bf16.mxu0 %v2347
  %2412 = vmatpush1.bf16.msra.mxu0 %v2346
  %2413 = vmatprep.subr.bf16.mxu0 %v2343
  %2414 = vmatpush1.bf16.msra.mxu0 %v2342
  %2415 = vmatprep.subr.bf16.mxu0 %v2339
  %2416 = vmatpush1.bf16.msra.mxu0 %v2338
  %2417 = vmatprep.subr.bf16.mxu0 %v2335
  %2418 = vmatpush1.bf16.msra.mxu0 %v2334
  %2419 = vmatprep.subr.bf16.mxu0 %v2331
  %2420 = vmatpush1.bf16.msra.mxu0 %v2330
  %2421 = vmatprep.subr.bf16.mxu0 0
  %2422 = vmatpush2.bf16.msra.mxu0 0
  %2423 = vmatprep.subr.bf16.mxu0 0
  %2424 = vmatpush2.bf16.msra.mxu0 0
  %2425 = vmatprep.subr.bf16.mxu0 0
  %2426 = vmatpush2.bf16.msra.mxu0 0
  %2427 = vmatprep.subr.bf16.mxu0 0
  %2428 = vmatpush2.bf16.msra.mxu0 0
  %2429 = vmatprep.subr.bf16.mxu0 0
  %2430 = vmatpush2.bf16.msra.mxu0 0
  %2431 = vmatprep.subr.bf16.mxu0 0
  %2432 = vmatpush2.bf16.msra.mxu0 0
  %2433 = vmatprep.subr.bf16.mxu0 0
  %2434 = vmatpush2.bf16.msra.mxu0 0
  %2435 = vmatprep.subr.bf16.mxu0 %v2363
  %2436 = vmatpush2.bf16.msra.mxu0 %v2362
  %2437 = vmatprep.mubr.bf16.mxu0 %v2403
  %2438 = vmatmul.mubr.bf16.gmra.mxu0 %v2219
  %v2439 = vpop.f32.mrf.mxu0
  %v2440 = vadd.f32 %v2206, %v2439
  %v2441 = vpop.f32.mrf.mxu0
  %v2442 = vadd.f32 %v2206, %v2441
  %v2443 = vpop.f32.mrf.mxu0
  %v2444 = vadd.f32 %v2211, %v2443
  %v2445 = vpop.f32.mrf.mxu0
  %v2446 = vadd.f32 %v2211, %v2445
  %2447 = vdwg.mxu0
  %2448 = vmatprep.subr.bf16.mxu0 %v2361
  %2449 = vmatpush1.bf16.msra.mxu0 %v2360
  %2450 = vmatprep.subr.bf16.mxu0 %v2357
  %2451 = vmatpush1.bf16.msra.mxu0 %v2356
  %2452 = vmatprep.subr.bf16.mxu0 %v2353
  %2453 = vmatpush1.bf16.msra.mxu0 %v2352
  %2454 = vmatprep.subr.bf16.mxu0 %v2349
  %2455 = vmatpush1.bf16.msra.mxu0 %v2348
  %2456 = vmatprep.subr.bf16.mxu0 %v2345
  %2457 = vmatpush1.bf16.msra.mxu0 %v2344
  %2458 = vmatprep.subr.bf16.mxu0 %v2341
  %2459 = vmatpush1.bf16.msra.mxu0 %v2340
  %2460 = vmatprep.subr.bf16.mxu0 %v2337
  %2461 = vmatpush1.bf16.msra.mxu0 %v2336
  %2462 = vmatprep.subr.bf16.mxu0 %v2333
  %2463 = vmatpush1.bf16.msra.mxu0 %v2332
  %2464 = vmatprep.subr.bf16.mxu0 0
  %2465 = vmatpush2.bf16.msra.mxu0 0
  %2466 = vmatprep.subr.bf16.mxu0 0
  %2467 = vmatpush2.bf16.msra.mxu0 0
  %2468 = vmatprep.subr.bf16.mxu0 0
  %2469 = vmatpush2.bf16.msra.mxu0 0
  %2470 = vmatprep.subr.bf16.mxu0 0
  %2471 = vmatpush2.bf16.msra.mxu0 0
  %2472 = vmatprep.subr.bf16.mxu0 0
  %2473 = vmatpush2.bf16.msra.mxu0 0
  %2474 = vmatprep.subr.bf16.mxu0 0
  %2475 = vmatpush2.bf16.msra.mxu0 0
  %2476 = vmatprep.subr.bf16.mxu0 0
  %2477 = vmatpush2.bf16.msra.mxu0 0
  %2478 = vmatprep.subr.bf16.mxu0 %v2365
  %2479 = vmatpush2.bf16.msra.mxu0 %v2364
  %2480 = vmatprep.mubr.bf16.mxu0 %v2403
  %2481 = vmatmul.mubr.bf16.gmra.mxu0 %v2219
  %v2482 = vpop.f32.mrf.mxu0
  %v2483 = vadd.f32 %v2206, %v2482
  %v2484 = vpop.f32.mrf.mxu0
  %v2485 = vadd.f32 %v2206, %v2484
  %v2486 = vpop.f32.mrf.mxu0
  %v2487 = vadd.f32 %v2211, %v2486
  %v2488 = vpop.f32.mrf.mxu0
  %v2489 = vadd.f32 %v2211, %v2488
  %2490 = vdwg.mxu0
  %v2491 = vmax.f32 %v2440, 0.0
  %v2492 = vmax.f32 %v2442, 0.0
  %v2493 = vmax.f32 %v2483, 0.0
  %v2494 = vmax.f32 %v2485, 0.0
  %v2495 = vmax.f32 %v2444, 0.0
  %v2496 = vmax.f32 %v2446, 0.0
  %v2497 = vmax.f32 %v2487, 0.0
  %v2498 = vmax.f32 %v2489, 0.0
  %2499 = vst [vmem:[%s9] sm:$0xff] %v2491
  %2500 = vst [vmem:[%s9 + $0x8] sm:$0xff] %v2492
  %2501 = vst [vmem:[%s9 + $0x10] sm:$0xff] %v2495
  %2502 = vst [vmem:[%s9 + $0x18] sm:$0xff] %v2496
  %s2503 = scalar_lea.vmem %s9, 32
  %2504 = vst [vmem:[%s2503] sm:$0xff] %v2493
  %2505 = vst [vmem:[%s2503 + $0x8] sm:$0xff] %v2494
  %2506 = vst [vmem:[%s2503 + $0x10] sm:$0xff] %v2497
  %2507 = vst [vmem:[%s2503 + $0x18] sm:$0xff] %v2498
  // Predicated region
  $region38: #{upblock_attention_high_forward.1} parent=0 // pred_check
    _
  $region39: #{upblock_attention_high_forward.1} parent=0 // pred_check_branch
    %2509 = sbr.rel (0) target = $region41
  $region40: #{upblock_attention_high_forward.1} parent=0 // pred_region
    _
  $region41: #{upblock_attention_high_forward.1} parent=0 // pred_fallthru
    _
  // Predicated region
  $region42: #{upblock_attention_high_forward.1} parent=0 // pred_check
    _
  $region43: #{upblock_attention_high_forward.1} parent=0 // pred_check_branch
    %2511 = sbr.rel (0) target = $region45
  $region44: #{upblock_attention_high_forward.1} parent=0 // pred_region
    _
  $region45: #{upblock_attention_high_forward.1} parent=0 // pred_fallthru
    _

</llo_original>
